<compile_context>
chip_gen: v7x
topology: tpu7x:2x2x1
jax: 0.10.0
libtpu: 0.0.40
codegen_flags: <defaults>
</compile_context>

<pallas_src>
import functools
import numpy as np
import jax
import jax.numpy as jnp
from jax import random
from jax.scipy.linalg import solve_triangular
from jax.experimental import pallas as pl
from jax.experimental.pallas import tpu as pltpu

LOG2PI = float(np.log(2.0 * np.pi))


# ---------------------------------------------------------------------------
# Fused kernel: latent sampling + log q / log p sums + SVGP expected log-lik.
# Grid: (MC-sample tiles ["parallel"], T tiles ["arbitrary" accumulator]).
# ---------------------------------------------------------------------------
def _gplvm_fused_kernel(eps_ref, mu_ref, ls_ref, y_ref, z_ref, kinv_ref,
                        qmu_ref, qvar_ref, lik_ref, lq_ref, lp_ref,
                        *, mc_tile, sf2, neg_half_inv_ell2, ell_const,
                        neg_half_inv_sn2):
    # eps_ref : (MC_TILE, d, Tt)   latent noise tile, lane-dense over trials*time
    # mu_ref, ls_ref : (d, Tt)     variational mean / log std of q(x)
    # y_ref   : (n, Tt)            data tile (lane-dense)
    # z_ref   : (n_z, d), kinv_ref : (n_z, n_z), qmu_ref/qvar_ref : (n, n_z)
    # lik_ref : (n, MC_TILE), lq_ref/lp_ref : (1, MC_TILE)  (resident over T tiles)

    # Zero the resident output accumulators on the first T tile.
    @pl.when(pl.program_id(1) == 0)
    def _():
        lik_ref[...] = jnp.zeros_like(lik_ref)
        lq_ref[...] = jnp.zeros_like(lq_ref)
        lp_ref[...] = jnp.zeros_like(lp_ref)

    mu = mu_ref[...]                                    # (d, Tt)
    ls = ls_ref[...]
    sig = jnp.exp(ls)
    y = y_ref[...]                                      # (n, Tt)
    z = z_ref[...]                                      # (n_z, d)
    d = z.shape[1]
    t_tile = mu.shape[1]

    # Hoisted MC-loop invariants.
    z_sq = jnp.sum(z * z, axis=-1, keepdims=True)       # (n_z, 1)
    kinv_b = kinv_ref[...].astype(jnp.bfloat16)
    qmu_b = qmu_ref[...].astype(jnp.bfloat16)
    qvar_b = qvar_ref[...].astype(jnp.bfloat16)
    sum_ls = jnp.sum(jnp.sum(ls, axis=-1, keepdims=True),
                     axis=0, keepdims=True)             # (1,1)
    norm_const = -0.5 * LOG2PI * float(d) * float(t_tile)   # python float

    # TODO(synk): if mc_tile is ever raised beyond ~8, switch this unrolled Python loop
    # to lax.fori_loop with pl.ds(mc, 1) stores to bound vreg live ranges.
    for mc in range(mc_tile):
        eps = eps_ref[mc]                                # (d, Tt), static index
        g = mu + sig * eps                               # reparameterized sample

        # log q(g|mu,sigma) / log p(g) tile contributions (reuse g*g for both Kuf & lp).
        eps_sq = jnp.sum(jnp.sum(eps * eps, axis=-1, keepdims=True),
                         axis=0, keepdims=True)          # (1,1)
        gg = g * g
        g_sq_row = jnp.sum(gg, axis=0, keepdims=True)    # (1, Tt) sublane reduce over d
        gg_sum = jnp.sum(g_sq_row, axis=-1, keepdims=True)   # (1,1)
        lq_11 = norm_const - sum_ls - 0.5 * eps_sq
        lp_11 = norm_const - 0.5 * gg_sum

        # RBF Kuf via matmul expansion (f32): ||z||^2 + ||g||^2 - 2 z.g
        gz = jnp.dot(z, g, preferred_element_type=jnp.float32)       # (n_z, Tt)
        sq = jnp.maximum(z_sq + g_sq_row - 2.0 * gz, 0.0)            # clamp cancellation
        kuf = sf2 * jnp.exp(neg_half_inv_ell2 * sq)                  # (n_z, Tt) f32

        # SVGP expected log-likelihood; bf16 operands on the MXU, f32 accumulation.
        alpha = jnp.dot(kinv_b, kuf.astype(jnp.bfloat16),
                        preferred_element_type=jnp.float32)          # (n_z, Tt)
        mean_f = jnp.dot(qmu_b, alpha.astype(jnp.bfloat16),
                         preferred_element_type=jnp.float32)         # (n, Tt)
        kfu_a = jnp.sum(kuf * alpha, axis=0, keepdims=True)          # (1, Tt) f32
        quad = jnp.dot(qvar_b, (alpha * alpha).astype(jnp.bfloat16),
                       preferred_element_type=jnp.float32)           # (n, Tt)
        var_f = jnp.maximum(sf2 - kfu_a + quad, 0.0)

        resid = y - mean_f
        ell = ell_const + neg_half_inv_sn2 * (resid * resid + var_f)  # (n, Tt)
        lik_col = jnp.sum(ell, axis=-1, keepdims=True)                # (n, 1)

        # Static column-slice accumulation (mc is a Python constant; no captured arrays).
        lik_ref[:, mc:mc + 1] = lik_ref[:, mc:mc + 1] + lik_col
        lq_ref[:, mc:mc + 1] = lq_ref[:, mc:mc + 1] + lq_11
        lp_ref[:, mc:mc + 1] = lp_ref[:, mc:mc + 1] + lp_11


def _pick_t_tile(T):
    for t in (1024, 512, 256, 128):
        if T % t == 0:
            return t
    return T


def _vmem_limit_bytes(mc_tile, d, t_tile, n, n_z):
    # Rough per-step VMEM budget (f32, (8,128)-padded), x2 headroom; floored at 8 MiB,
    # capped at v7x's 64 MiB physical per-core VMEM (safe on v5e/v6e as well).
    f32 = 4
    d_p, n_p, nz_p = max(d, 8), max(n, 8), max(n_z, 8)
    t_p = max(t_tile, 128)
    lane = 128
    elems = (2 * mc_tile * d_p * t_p          # eps tile, double-buffered
             + 2 * 2 * d_p * t_p              # mu, log_sigma
             + 2 * n_p * t_p                  # y
             + (2 * nz_p + 2 * n_p) * lane    # z, Kuu^-1, q_mu, q_var
             + 2 * (n_p + 16) * lane          # outputs
             + 12 * (nz_p + n_p) * t_p)       # live f32 temporaries
    return int(min(max(2 * f32 * elems, 8 << 20), 64 << 20))


def gplvm_fused(eps_dt, mu_dt, ls_dt, y_nt, z, kuu_inv, q_mu, q_var,
                *, sf2, ell2, sn2, mc_tile, t_tile):
    n_mc, d, T = eps_dt.shape
    n = y_nt.shape[0]
    n_z = z.shape[0]
    assert n_mc % mc_tile == 0 and T % t_tile == 0
    mc_blocks = n_mc // mc_tile
    t_blocks = T // t_tile

    kernel = functools.partial(
        _gplvm_fused_kernel,
        mc_tile=mc_tile,
        sf2=float(sf2),
        neg_half_inv_ell2=float(-0.5 / ell2),
        ell_const=float(-0.5 * np.log(2.0 * np.pi * sn2)),
        neg_half_inv_sn2=float(-0.5 / sn2),
    )

    lik_blk, lq_blk, lp_blk = pl.pallas_call(
        kernel,
        grid=(mc_blocks, t_blocks),
        in_specs=[
            pl.BlockSpec((mc_tile, d, t_tile), lambda i, j: (i, 0, j)),  # eps (d, T) tile
            pl.BlockSpec((d, t_tile), lambda i, j: (0, j)),              # mu
            pl.BlockSpec((d, t_tile), lambda i, j: (0, j)),              # log_sigma
            pl.BlockSpec((n, t_tile), lambda i, j: (0, j)),              # y (lane-dense)
            pl.BlockSpec((n_z, d), lambda i, j: (0, 0)),                 # z
            pl.BlockSpec((n_z, n_z), lambda i, j: (0, 0)),               # Kuu^-1
            pl.BlockSpec((n, n_z), lambda i, j: (0, 0)),                 # q_mu
            pl.BlockSpec((n, n_z), lambda i, j: (0, 0)),                 # q_var
        ],
        out_specs=(
            pl.BlockSpec((None, n, mc_tile), lambda i, j: (i, 0, 0)),    # resident over j
            pl.BlockSpec((None, 1, mc_tile), lambda i, j: (i, 0, 0)),
            pl.BlockSpec((None, 1, mc_tile), lambda i, j: (i, 0, 0)),
        ),
        out_shape=(
            jax.ShapeDtypeStruct((mc_blocks, n, mc_tile), jnp.float32),
            jax.ShapeDtypeStruct((mc_blocks, 1, mc_tile), jnp.float32),
            jax.ShapeDtypeStruct((mc_blocks, 1, mc_tile), jnp.float32),
        ),
        compiler_params=pltpu.CompilerParams(
            dimension_semantics=("parallel", "arbitrary"),
            vmem_limit_bytes=_vmem_limit_bytes(mc_tile, d, t_tile, n, n_z)),
    )(eps_dt, mu_dt, ls_dt, y_nt, z, kuu_inv, q_mu, q_var)
    return lik_blk, lq_blk, lp_blk


# ---------------------------------------------------------------------------
# Glue (plain JAX): Kuu Cholesky / inverse / logdet, KL[q(u)||p(u)], ELBO assembly.
# ---------------------------------------------------------------------------
def _kuu_inv_logdet(z, sf2, ell2, jitter):
    # TODO(synk): Cholesky factorization / triangular solve has no clean Pallas
    # equivalent; it stays in plain JAX (tiny: n_z x n_z).
    n_z = z.shape[0]
    zz = jnp.sum((z[:, None, :] - z[None, :, :]) ** 2, axis=-1)
    kuu = sf2 * jnp.exp(-0.5 * zz / ell2) + jitter * jnp.eye(n_z, dtype=jnp.float32)
    l_chol = jnp.linalg.cholesky(kuu)
    l_inv = solve_triangular(l_chol, jnp.eye(n_z, dtype=jnp.float32), lower=True)
    kuu_inv = l_inv.T @ l_inv
    logdet_kuu = 2.0 * jnp.sum(jnp.log(jnp.diag(l_chol)))
    return kuu_inv, logdet_kuu


def gplvm_forward(data, eps, params, *, sf2, ell2, sn2, jitter=1e-4,
                  mc_tile=None, t_tile=None):
    """data: (n_samples, n, m); eps: (n_mc, n_samples, m, d). Returns (lik, kl) scalars."""
    n_samples, n, m = data.shape
    n_mc, _, _, d = eps.shape
    z, q_mu, q_log_var = params["z"], params["q_mu"], params["q_log_var"]
    n_z = z.shape[0]
    T = n_samples * m

    # >=4 MC grid steps by default: both v7x TensorCores get a pipelined stream,
    # and the eps-tile DMA double-buffers under compute on every generation.
    if mc_tile is None:
        if n_mc % 4 == 0:
            mc_tile = max(n_mc // 4, 1)
        elif n_mc % 2 == 0:
            mc_tile = n_mc // 2
        else:
            mc_tile = n_mc
    if t_tile is None:
        t_tile = _pick_t_tile(T)

    # Lane-friendly layout plumbing (pure reshape/transpose, no compute):
    eps_dt = jnp.transpose(eps.reshape(n_mc, T, d), (0, 2, 1))       # (n_mc, d, T)
    mu_dt = params["mu"].reshape(T, d).T                             # (d, T)
    ls_dt = params["log_sigma"].reshape(T, d).T                      # (d, T)
    y_nt = jnp.transpose(data, (1, 0, 2)).reshape(n, T)              # (n, T), lane-dense

    kuu_inv, logdet_kuu = _kuu_inv_logdet(z, sf2, ell2, jitter)
    q_var = jnp.exp(q_log_var)

    lik_blk, lq_blk, lp_blk = gplvm_fused(
        eps_dt, mu_dt, ls_dt, y_nt, z, kuu_inv, q_mu, q_var,
        sf2=sf2, ell2=ell2, sn2=sn2, mc_tile=mc_tile, t_tile=t_tile)

    svgp_lik_val = jnp.transpose(lik_blk, (0, 2, 1)).reshape(n_mc, n)   # (n_mc, n)
    lq_sum = lq_blk.reshape(n_mc)                                       # sum_{S,m,d} log q
    lp_sum = lp_blk.reshape(n_mc)                                       # sum_{S,m,d} log p

    # KL[q(u)||p(u)] per neuron (cheap glue)
    tr_term = jnp.sum(jnp.diag(kuu_inv)[None, :] * q_var, axis=1)       # (n,)
    quad = jnp.einsum("ni,ij,nj->n", q_mu, kuu_inv, q_mu)               # (n,)
    logdet_s = jnp.sum(q_log_var, axis=1)                               # (n,)
    kl_u = 0.5 * (tr_term + quad - n_z + logdet_kuu - logdet_s)         # (n,)

    # Gplvm.elbo combination (batch_idxs / sample_idxs = None -> scale factors are 1)
    lik = svgp_lik_val - kl_u[None, :]                                  # (n_mc, n)
    kl = lq_sum - lp_sum                                                # (n_mc,)
    batch_size, sample_size = m, n_samples
    kl = (m / batch_size) * (n_samples / sample_size) * kl

    # Gplvm.forward
    lik_out = jnp.sum(lik, axis=-1).mean()
    kl_out = kl.mean()
    return lik_out, kl_out


# ---------------------------------------------------------------------------
# Pure-JAX reference (same math, un-fused) for a sanity check.
# ---------------------------------------------------------------------------
def _reference(data, eps, params, *, sf2, ell2, sn2, jitter=1e-4):
    n_samples, n, m = data.shape
    n_mc = eps.shape[0]
    z = params["z"]
    n_z = z.shape[0]
    mu, ls = params["mu"], params["log_sigma"]
    sig = jnp.exp(ls)
    g = mu[None] + sig[None] * eps                                        # (n_mc,S,m,d)
    lq = jnp.sum(-0.5 * LOG2PI - ls[None] - 0.5 * eps ** 2, axis=-1)      # (n_mc,S,m)
    lp = jnp.sum(-0.5 * LOG2PI - 0.5 * g ** 2, axis=-1)
    kuu_inv, logdet_kuu = _kuu_inv_logdet(z, sf2, ell2, jitter)
    q_mu, q_log_var = params["q_mu"], params["q_log_var"]
    q_var = jnp.exp(q_log_var)
    diff = z[None, None, :, None, :] - g[:, :, None, :, :]                # (n_mc,S,n_z,m,d)
    sq = jnp.sum(diff ** 2, axis=-1)
    kuf = sf2 * jnp.exp(-0.5 * sq / ell2)                                 # (n_mc,S,n_z,m)
    alpha = jnp.einsum("uv,csvm->csum", kuu_inv, kuf)
    mean_f = jnp.einsum("nu,csum->csnm", q_mu, alpha)
    kfu_a = jnp.sum(kuf * alpha, axis=2)                                  # (n_mc,S,m)
    quad = jnp.einsum("nu,csum->csnm", q_var, alpha ** 2)
    var_f = jnp.maximum(sf2 - kfu_a[:, :, None, :] + quad, 0.0)
    resid = data[None] - mean_f
    ell = -0.5 * jnp.log(2 * jnp.pi * sn2) - 0.5 * (resid ** 2 + var_f) / sn2
    lik_nm = jnp.sum(ell, axis=(1, 3))                                    # (n_mc,n)
    tr = jnp.sum(jnp.diag(kuu_inv)[None, :] * q_var, axis=1)
    qd = jnp.einsum("ni,ij,nj->n", q_mu, kuu_inv, q_mu)
    kl_u = 0.5 * (tr + qd - n_z + logdet_kuu - jnp.sum(q_log_var, axis=1))
    lik = lik_nm - kl_u[None, :]
    kl = jnp.sum(lq, axis=(-1, -2)) - jnp.sum(lp, axis=(-1, -2))
    return jnp.sum(lik, axis=-1).mean(), kl.mean()


if __name__ == "__main__":
    # small shapes consistent with the module: n neurons, m time points, n_samples trials
    n, m, n_samples, d_latent, n_z, n_mc = 8, 16, 2, 4, 8, 8

    key = random.PRNGKey(0)
    ks = random.split(key, 7)
    data = random.normal(ks[0], (n_samples, n, m), jnp.float32)          # (n_samples, n, m)
    params = {
        "mu":        0.1 * random.normal(ks[1], (n_samples, m, d_latent), jnp.float32),
        "log_sigma": -1.0 + 0.05 * random.normal(ks[2], (n_samples, m, d_latent), jnp.float32),
        "z":         random.normal(ks[3], (n_z, d_latent), jnp.float32),
        "q_mu":      0.1 * random.normal(ks[4], (n, n_z), jnp.float32),
        "q_log_var": -1.0 + 0.05 * random.normal(ks[5], (n, n_z), jnp.float32),
    }
    eps = random.normal(ks[6], (n_mc, n_samples, m, d_latent), jnp.float32)

    sf2, ell2, sn2 = 1.0, 1.5 ** 2, 0.5 ** 2  # kernel variance, lengthscale^2, noise variance

    lik, kl = gplvm_forward(data, eps, params, sf2=sf2, ell2=ell2, sn2=sn2)
    jax.block_until_ready((lik, kl))
    assert lik.shape == () and kl.shape == ()
    assert bool(jnp.isfinite(lik)) and bool(jnp.isfinite(kl))

    lik_ref, kl_ref = _reference(data, eps, params, sf2=sf2, ell2=ell2, sn2=sn2)
    assert bool(jnp.allclose(lik, lik_ref, rtol=1e-2, atol=1e-2)), (lik, lik_ref)
    assert bool(jnp.allclose(kl, kl_ref, rtol=1e-2, atol=1e-2)), (kl, kl_ref)

    print("KERNEL_OK")
</pallas_src>

<mosaic_0001>
module attributes {stable_mosaic.version = 11 : i64} {
  func.func @_gplvm_fused_kernel(%arg0: i32, %arg1: i32, %arg2: memref<2x4x32xf32, #tpu.memory_space<vmem>>, %arg3: memref<4x32xf32, #tpu.memory_space<vmem>>, %arg4: memref<4x32xf32, #tpu.memory_space<vmem>>, %arg5: memref<8x32xf32, #tpu.memory_space<vmem>>, %arg6: memref<8x4xf32, #tpu.memory_space<vmem>>, %arg7: memref<8x8xf32, #tpu.memory_space<vmem>>, %arg8: memref<8x8xf32, #tpu.memory_space<vmem>>, %arg9: memref<8x8xf32, #tpu.memory_space<vmem>>, %arg10: memref<1x8x2xf32, #tpu.memory_space<vmem>>, %arg11: memref<1x1x2xf32, #tpu.memory_space<vmem>>, %arg12: memref<1x1x2xf32, #tpu.memory_space<vmem>>) attributes {dimension_semantics = [#tpu.dimension_semantics<parallel>, #tpu.dimension_semantics<arbitrary>], iteration_bounds = array<i64: 4, 1>, scalar_prefetch = 0 : i64, scratch_operands = 0 : i64, tpu.core_type = #tpu.core_type<tc>, window_params = [{transform_indices = @transform_0, window_bounds = array<i64: 2, 4, 32>}, {transform_indices = @transform_1, window_bounds = array<i64: 4, 32>}, {transform_indices = @transform_2, window_bounds = array<i64: 4, 32>}, {transform_indices = @transform_3, window_bounds = array<i64: 8, 32>}, {pipeline_mode = #tpu.pipeline_mode<synchronous>, transform_indices = @transform_4, window_bounds = array<i64: 8, 4>}, {pipeline_mode = #tpu.pipeline_mode<synchronous>, transform_indices = @transform_5, window_bounds = array<i64: 8, 8>}, {pipeline_mode = #tpu.pipeline_mode<synchronous>, transform_indices = @transform_6, window_bounds = array<i64: 8, 8>}, {pipeline_mode = #tpu.pipeline_mode<synchronous>, transform_indices = @transform_7, window_bounds = array<i64: 8, 8>}, {transform_indices = @transform_8, window_bounds = array<i64: 1, 8, 2>}, {transform_indices = @transform_9, window_bounds = array<i64: 1, 1, 2>}, {transform_indices = @transform_10, window_bounds = array<i64: 1, 1, 2>}]} {
    %c0_i32 = arith.constant 0 : i32
    %0 = arith.cmpi eq, %arg1, %c0_i32 : i32
    %1 = arith.extui %0 : i1 to i32
    %c0_i32_0 = arith.constant 0 : i32
    %2 = arith.cmpi ne, %1, %c0_i32_0 : i32
    scf.if %2 {
      %cst_101 = arith.constant 0.000000e+00 : f32
      %181 = vector.broadcast %cst_101 : f32 to vector<8x2xf32>
      %c0_102 = arith.constant 0 : index
      %c0_103 = arith.constant 0 : index
      %c0_104 = arith.constant 0 : index
      %182 = vector.load %arg10[%c0_102, %c0_103, %c0_104] : memref<1x8x2xf32, #tpu.memory_space<vmem>>, vector<1x8x2xf32>
      %183 = vector.shape_cast %182 : vector<1x8x2xf32> to vector<8x2xf32>
      %184 = vector.shape_cast %181 : vector<8x2xf32> to vector<1x8x2xf32>
      tpu.vector_store %arg10[%c0_102, %c0_103, %c0_104], %184 {strides = array<i32>} : memref<1x8x2xf32, #tpu.memory_space<vmem>>, vector<1x8x2xf32>,
      %cst_105 = arith.constant 0.000000e+00 : f32
      %185 = vector.broadcast %cst_105 : f32 to vector<1x2xf32>
      %c0_106 = arith.constant 0 : index
      %c0_107 = arith.constant 0 : index
      %c0_108 = arith.constant 0 : index
      %186 = vector.load %arg11[%c0_106, %c0_107, %c0_108] : memref<1x1x2xf32, #tpu.memory_space<vmem>>, vector<1x1x2xf32>
      %187 = vector.shape_cast %186 : vector<1x1x2xf32> to vector<1x2xf32>
      %188 = vector.shape_cast %185 : vector<1x2xf32> to vector<1x1x2xf32>
      tpu.vector_store %arg11[%c0_106, %c0_107, %c0_108], %188 {strides = array<i32>} : memref<1x1x2xf32, #tpu.memory_space<vmem>>, vector<1x1x2xf32>,
      %cst_109 = arith.constant 0.000000e+00 : f32
      %189 = vector.broadcast %cst_109 : f32 to vector<1x2xf32>
      %c0_110 = arith.constant 0 : index
      %c0_111 = arith.constant 0 : index
      %c0_112 = arith.constant 0 : index
      %190 = vector.load %arg12[%c0_110, %c0_111, %c0_112] : memref<1x1x2xf32, #tpu.memory_space<vmem>>, vector<1x1x2xf32>
      %191 = vector.shape_cast %190 : vector<1x1x2xf32> to vector<1x2xf32>
      %192 = vector.shape_cast %189 : vector<1x2xf32> to vector<1x1x2xf32>
      tpu.vector_store %arg12[%c0_110, %c0_111, %c0_112], %192 {strides = array<i32>} : memref<1x1x2xf32, #tpu.memory_space<vmem>>, vector<1x1x2xf32>,
    } else {
    }
    %c0 = arith.constant 0 : index
    %c0_1 = arith.constant 0 : index
    %3 = vector.load %arg3[%c0, %c0_1] : memref<4x32xf32, #tpu.memory_space<vmem>>, vector<4x32xf32>
    %c0_2 = arith.constant 0 : index
    %c0_3 = arith.constant 0 : index
    %4 = vector.load %arg4[%c0_2, %c0_3] : memref<4x32xf32, #tpu.memory_space<vmem>>, vector<4x32xf32>
    %5 = math.exp %4 : vector<4x32xf32>
    %c0_4 = arith.constant 0 : index
    %c0_5 = arith.constant 0 : index
    %6 = vector.load %arg5[%c0_4, %c0_5] : memref<8x32xf32, #tpu.memory_space<vmem>>, vector<8x32xf32>
    %c0_6 = arith.constant 0 : index
    %c0_7 = arith.constant 0 : index
    %7 = vector.load %arg6[%c0_6, %c0_7] : memref<8x4xf32, #tpu.memory_space<vmem>>, vector<8x4xf32>
    %8 = arith.mulf %7, %7 : vector<8x4xf32>
    %cst = arith.constant dense<0.000000e+00> : vector<8xf32>
    %9 = vector.multi_reduction <add>, %8, %cst [1] : vector<8x4xf32> to vector<8xf32>
    %10 = vector.shape_cast %9 : vector<8xf32> to vector<8x1xf32>
    %c0_8 = arith.constant 0 : index
    %c0_9 = arith.constant 0 : index
    %11 = vector.load %arg7[%c0_8, %c0_9] : memref<8x8xf32, #tpu.memory_space<vmem>>, vector<8x8xf32>
    %12 = arith.truncf %11 : vector<8x8xf32> to vector<8x8xbf16>
    %c0_10 = arith.constant 0 : index
    %c0_11 = arith.constant 0 : index
    %13 = vector.load %arg8[%c0_10, %c0_11] : memref<8x8xf32, #tpu.memory_space<vmem>>, vector<8x8xf32>
    %14 = arith.truncf %13 : vector<8x8xf32> to vector<8x8xbf16>
    %c0_12 = arith.constant 0 : index
    %c0_13 = arith.constant 0 : index
    %15 = vector.load %arg9[%c0_12, %c0_13] : memref<8x8xf32, #tpu.memory_space<vmem>>, vector<8x8xf32>
    %16 = arith.truncf %15 : vector<8x8xf32> to vector<8x8xbf16>
    %cst_14 = arith.constant dense<0.000000e+00> : vector<4xf32>
    %17 = vector.multi_reduction <add>, %4, %cst_14 [1] : vector<4x32xf32> to vector<4xf32>
    %18 = vector.shape_cast %17 : vector<4xf32> to vector<4x1xf32>
    %cst_15 = arith.constant dense<0.000000e+00> : vector<1xf32>
    %19 = vector.multi_reduction <add>, %18, %cst_15 [0] : vector<4x1xf32> to vector<1xf32>
    %20 = vector.shape_cast %19 : vector<1xf32> to vector<1x1xf32>
    %c0_16 = arith.constant 0 : index
    %c0_17 = arith.constant 0 : index
    %c0_18 = arith.constant 0 : index
    %21 = vector.load %arg2[%c0_16, %c0_17, %c0_18] : memref<2x4x32xf32, #tpu.memory_space<vmem>>, vector<1x4x32xf32>
    %22 = vector.shape_cast %21 : vector<1x4x32xf32> to vector<4x32xf32>
    %23 = arith.mulf %5, %22 : vector<4x32xf32>
    %24 = arith.addf %3, %23 : vector<4x32xf32>
    %25 = arith.mulf %22, %22 : vector<4x32xf32>
    %cst_19 = arith.constant dense<0.000000e+00> : vector<4xf32>
    %26 = vector.multi_reduction <add>, %25, %cst_19 [1] : vector<4x32xf32> to vector<4xf32>
    %27 = vector.shape_cast %26 : vector<4xf32> to vector<4x1xf32>
    %cst_20 = arith.constant dense<0.000000e+00> : vector<1xf32>
    %28 = vector.multi_reduction <add>, %27, %cst_20 [0] : vector<4x1xf32> to vector<1xf32>
    %29 = vector.shape_cast %28 : vector<1xf32> to vector<1x1xf32>
    %30 = arith.mulf %24, %24 : vector<4x32xf32>
    %cst_21 = arith.constant dense<0.000000e+00> : vector<32xf32>
    %31 = vector.multi_reduction <add>, %30, %cst_21 [0] : vector<4x32xf32> to vector<32xf32>
    %32 = vector.shape_cast %31 : vector<32xf32> to vector<1x32xf32>
    %cst_22 = arith.constant dense<0.000000e+00> : vector<1xf32>
    %33 = vector.multi_reduction <add>, %32, %cst_22 [1] : vector<1x32xf32> to vector<1xf32>
    %34 = vector.shape_cast %33 : vector<1xf32> to vector<1x1xf32>
    %cst_23 = arith.constant -117.62413 : f32
    %35 = vector.broadcast %cst_23 : f32 to vector<1x1xf32>
    %36 = arith.subf %35, %20 : vector<1x1xf32>
    %cst_24 = arith.constant 5.000000e-01 : f32
    %37 = vector.broadcast %cst_24 : f32 to vector<1x1xf32>
    %38 = arith.mulf %37, %29 : vector<1x1xf32>
    %39 = arith.subf %36, %38 : vector<1x1xf32>
    %cst_25 = arith.constant 5.000000e-01 : f32
    %40 = vector.broadcast %cst_25 : f32 to vector<1x1xf32>
    %41 = arith.mulf %40, %34 : vector<1x1xf32>
    %cst_26 = arith.constant -117.62413 : f32
    %42 = vector.broadcast %cst_26 : f32 to vector<1x1xf32>
    %43 = arith.subf %42, %41 : vector<1x1xf32>
    %cst_27 = arith.constant dense<0.000000e+00> : vector<8x32xf32>
    %44 = tpu.matmul %7, %24, %cst_27 {dimension_numbers = #tpu.dot_dimension_numbers<[1], [0], [0], [1], [0, 0, 1, 1], [], []>} : vector<8x4xf32>, vector<4x32xf32>, vector<8x32xf32> -> vector<8x32xf32>
    %45 = vector.broadcast %10 : vector<8x1xf32> to vector<8x32xf32>
    %46 = vector.broadcast %32 : vector<1x32xf32> to vector<8x32xf32>
    %47 = arith.addf %45, %46 : vector<8x32xf32>
    %cst_28 = arith.constant 2.000000e+00 : f32
    %48 = vector.broadcast %cst_28 : f32 to vector<8x32xf32>
    %49 = arith.mulf %48, %44 : vector<8x32xf32>
    %50 = arith.subf %47, %49 : vector<8x32xf32>
    %cst_29 = arith.constant 0.000000e+00 : f32
    %51 = vector.broadcast %cst_29 : f32 to vector<8x32xf32>
    %52 = arith.maximumf %50, %51 : vector<8x32xf32>
    %cst_30 = arith.constant -0.222222224 : f32
    %53 = vector.broadcast %cst_30 : f32 to vector<8x32xf32>
    %54 = arith.mulf %53, %52 : vector<8x32xf32>
    %55 = math.exp %54 : vector<8x32xf32>
    %cst_31 = arith.constant 1.000000e+00 : f32
    %56 = vector.broadcast %cst_31 : f32 to vector<8x32xf32>
    %57 = arith.mulf %56, %55 : vector<8x32xf32>
    %58 = arith.truncf %57 : vector<8x32xf32> to vector<8x32xbf16>
    %cst_32 = arith.constant dense<0.000000e+00> : vector<8x32xf32>
    %59 = tpu.matmul %12, %58, %cst_32 {dimension_numbers = #tpu.dot_dimension_numbers<[1], [0], [0], [1], [0, 0, 1, 1], [], []>} : vector<8x8xbf16>, vector<8x32xbf16>, vector<8x32xf32> -> vector<8x32xf32>
    %60 = arith.truncf %59 : vector<8x32xf32> to vector<8x32xbf16>
    %cst_33 = arith.constant dense<0.000000e+00> : vector<8x32xf32>
    %61 = tpu.matmul %14, %60, %cst_33 {dimension_numbers = #tpu.dot_dimension_numbers<[1], [0], [0], [1], [0, 0, 1, 1], [], []>} : vector<8x8xbf16>, vector<8x32xbf16>, vector<8x32xf32> -> vector<8x32xf32>
    %62 = arith.mulf %57, %59 : vector<8x32xf32>
    %cst_34 = arith.constant dense<0.000000e+00> : vector<32xf32>
    %63 = vector.multi_reduction <add>, %62, %cst_34 [0] : vector<8x32xf32> to vector<32xf32>
    %64 = vector.shape_cast %63 : vector<32xf32> to vector<1x32xf32>
    %65 = arith.mulf %59, %59 : vector<8x32xf32>
    %66 = arith.truncf %65 : vector<8x32xf32> to vector<8x32xbf16>
    %cst_35 = arith.constant dense<0.000000e+00> : vector<8x32xf32>
    %67 = tpu.matmul %16, %66, %cst_35 {dimension_numbers = #tpu.dot_dimension_numbers<[1], [0], [0], [1], [0, 0, 1, 1], [], []>} : vector<8x8xbf16>, vector<8x32xbf16>, vector<8x32xf32> -> vector<8x32xf32>
    %cst_36 = arith.constant 1.000000e+00 : f32
    %68 = vector.broadcast %cst_36 : f32 to vector<1x32xf32>
    %69 = arith.subf %68, %64 : vector<1x32xf32>
    %70 = vector.broadcast %69 : vector<1x32xf32> to vector<8x32xf32>
    %71 = arith.addf %70, %67 : vector<8x32xf32>
    %cst_37 = arith.constant 0.000000e+00 : f32
    %72 = vector.broadcast %cst_37 : f32 to vector<8x32xf32>
    %73 = arith.maximumf %71, %72 : vector<8x32xf32>
    %74 = arith.subf %6, %61 : vector<8x32xf32>
    %75 = arith.mulf %74, %74 : vector<8x32xf32>
    %76 = arith.addf %75, %73 : vector<8x32xf32>
    %cst_38 = arith.constant -2.000000e+00 : f32
    %77 = vector.broadcast %cst_38 : f32 to vector<8x32xf32>
    %78 = arith.mulf %77, %76 : vector<8x32xf32>
    %cst_39 = arith.constant -0.22579135 : f32
    %79 = vector.broadcast %cst_39 : f32 to vector<8x32xf32>
    %80 = arith.addf %79, %78 : vector<8x32xf32>
    %cst_40 = arith.constant dense<0.000000e+00> : vector<8xf32>
    %81 = vector.multi_reduction <add>, %80, %cst_40 [1] : vector<8x32xf32> to vector<8xf32>
    %82 = vector.shape_cast %81 : vector<8xf32> to vector<8x1xf32>
    %c0_41 = arith.constant 0 : index
    %c0_42 = arith.constant 0 : index
    %c0_43 = arith.constant 0 : index
    %83 = vector.load %arg10[%c0_41, %c0_42, %c0_43] : memref<1x8x2xf32, #tpu.memory_space<vmem>>, vector<1x8x1xf32>
    %84 = vector.shape_cast %83 : vector<1x8x1xf32> to vector<8x1xf32>
    %85 = arith.addf %84, %82 : vector<8x1xf32>
    %c0_44 = arith.constant 0 : index
    %c0_45 = arith.constant 0 : index
    %c0_46 = arith.constant 0 : index
    %86 = vector.load %arg10[%c0_44, %c0_45, %c0_46] : memref<1x8x2xf32, #tpu.memory_space<vmem>>, vector<1x8x1xf32>
    %87 = vector.shape_cast %86 : vector<1x8x1xf32> to vector<8x1xf32>
    %88 = vector.shape_cast %85 : vector<8x1xf32> to vector<1x8x1xf32>
    tpu.vector_store %arg10[%c0_44, %c0_45, %c0_46], %88 {strides = array<i32>} : memref<1x8x2xf32, #tpu.memory_space<vmem>>, vector<1x8x1xf32>,
    %c0_47 = arith.constant 0 : index
    %c0_48 = arith.constant 0 : index
    %c0_49 = arith.constant 0 : index
    %89 = vector.load %arg11[%c0_47, %c0_48, %c0_49] : memref<1x1x2xf32, #tpu.memory_space<vmem>>, vector<1x1x1xf32>
    %90 = vector.shape_cast %89 : vector<1x1x1xf32> to vector<1x1xf32>
    %91 = arith.addf %90, %39 : vector<1x1xf32>
    %c0_50 = arith.constant 0 : index
    %c0_51 = arith.constant 0 : index
    %c0_52 = arith.constant 0 : index
    %92 = vector.load %arg11[%c0_50, %c0_51, %c0_52] : memref<1x1x2xf32, #tpu.memory_space<vmem>>, vector<1x1x1xf32>
    %93 = vector.shape_cast %92 : vector<1x1x1xf32> to vector<1x1xf32>
    %94 = vector.shape_cast %91 : vector<1x1xf32> to vector<1x1x1xf32>
    tpu.vector_store %arg11[%c0_50, %c0_51, %c0_52], %94 {strides = array<i32>} : memref<1x1x2xf32, #tpu.memory_space<vmem>>, vector<1x1x1xf32>,
    %c0_53 = arith.constant 0 : index
    %c0_54 = arith.constant 0 : index
    %c0_55 = arith.constant 0 : index
    %95 = vector.load %arg12[%c0_53, %c0_54, %c0_55] : memref<1x1x2xf32, #tpu.memory_space<vmem>>, vector<1x1x1xf32>
    %96 = vector.shape_cast %95 : vector<1x1x1xf32> to vector<1x1xf32>
    %97 = arith.addf %96, %43 : vector<1x1xf32>
    %c0_56 = arith.constant 0 : index
    %c0_57 = arith.constant 0 : index
    %c0_58 = arith.constant 0 : index
    %98 = vector.load %arg12[%c0_56, %c0_57, %c0_58] : memref<1x1x2xf32, #tpu.memory_space<vmem>>, vector<1x1x1xf32>
    %99 = vector.shape_cast %98 : vector<1x1x1xf32> to vector<1x1xf32>
    %100 = vector.shape_cast %97 : vector<1x1xf32> to vector<1x1x1xf32>
    tpu.vector_store %arg12[%c0_56, %c0_57, %c0_58], %100 {strides = array<i32>} : memref<1x1x2xf32, #tpu.memory_space<vmem>>, vector<1x1x1xf32>,
    %c1 = arith.constant 1 : index
    %c0_59 = arith.constant 0 : index
    %c0_60 = arith.constant 0 : index
    %101 = vector.load %arg2[%c1, %c0_59, %c0_60] : memref<2x4x32xf32, #tpu.memory_space<vmem>>, vector<1x4x32xf32>
    %102 = vector.shape_cast %101 : vector<1x4x32xf32> to vector<4x32xf32>
    %103 = arith.mulf %5, %102 : vector<4x32xf32>
    %104 = arith.addf %3, %103 : vector<4x32xf32>
    %105 = arith.mulf %102, %102 : vector<4x32xf32>
    %cst_61 = arith.constant dense<0.000000e+00> : vector<4xf32>
    %106 = vector.multi_reduction <add>, %105, %cst_61 [1] : vector<4x32xf32> to vector<4xf32>
    %107 = vector.shape_cast %106 : vector<4xf32> to vector<4x1xf32>
    %cst_62 = arith.constant dense<0.000000e+00> : vector<1xf32>
    %108 = vector.multi_reduction <add>, %107, %cst_62 [0] : vector<4x1xf32> to vector<1xf32>
    %109 = vector.shape_cast %108 : vector<1xf32> to vector<1x1xf32>
    %110 = arith.mulf %104, %104 : vector<4x32xf32>
    %cst_63 = arith.constant dense<0.000000e+00> : vector<32xf32>
    %111 = vector.multi_reduction <add>, %110, %cst_63 [0] : vector<4x32xf32> to vector<32xf32>
    %112 = vector.shape_cast %111 : vector<32xf32> to vector<1x32xf32>
    %cst_64 = arith.constant dense<0.000000e+00> : vector<1xf32>
    %113 = vector.multi_reduction <add>, %112, %cst_64 [1] : vector<1x32xf32> to vector<1xf32>
    %114 = vector.shape_cast %113 : vector<1xf32> to vector<1x1xf32>
    %cst_65 = arith.constant -117.62413 : f32
    %115 = vector.broadcast %cst_65 : f32 to vector<1x1xf32>
    %116 = arith.subf %115, %20 : vector<1x1xf32>
    %cst_66 = arith.constant 5.000000e-01 : f32
    %117 = vector.broadcast %cst_66 : f32 to vector<1x1xf32>
    %118 = arith.mulf %117, %109 : vector<1x1xf32>
    %119 = arith.subf %116, %118 : vector<1x1xf32>
    %cst_67 = arith.constant 5.000000e-01 : f32
    %120 = vector.broadcast %cst_67 : f32 to vector<1x1xf32>
    %121 = arith.mulf %120, %114 : vector<1x1xf32>
    %cst_68 = arith.constant -117.62413 : f32
    %122 = vector.broadcast %cst_68 : f32 to vector<1x1xf32>
    %123 = arith.subf %122, %121 : vector<1x1xf32>
    %cst_69 = arith.constant dense<0.000000e+00> : vector<8x32xf32>
    %124 = tpu.matmul %7, %104, %cst_69 {dimension_numbers = #tpu.dot_dimension_numbers<[1], [0], [0], [1], [0, 0, 1, 1], [], []>} : vector<8x4xf32>, vector<4x32xf32>, vector<8x32xf32> -> vector<8x32xf32>
    %125 = vector.broadcast %10 : vector<8x1xf32> to vector<8x32xf32>
    %126 = vector.broadcast %112 : vector<1x32xf32> to vector<8x32xf32>
    %127 = arith.addf %125, %126 : vector<8x32xf32>
    %cst_70 = arith.constant 2.000000e+00 : f32
    %128 = vector.broadcast %cst_70 : f32 to vector<8x32xf32>
    %129 = arith.mulf %128, %124 : vector<8x32xf32>
    %130 = arith.subf %127, %129 : vector<8x32xf32>
    %cst_71 = arith.constant 0.000000e+00 : f32
    %131 = vector.broadcast %cst_71 : f32 to vector<8x32xf32>
    %132 = arith.maximumf %130, %131 : vector<8x32xf32>
    %cst_72 = arith.constant -0.222222224 : f32
    %133 = vector.broadcast %cst_72 : f32 to vector<8x32xf32>
    %134 = arith.mulf %133, %132 : vector<8x32xf32>
    %135 = math.exp %134 : vector<8x32xf32>
    %cst_73 = arith.constant 1.000000e+00 : f32
    %136 = vector.broadcast %cst_73 : f32 to vector<8x32xf32>
    %137 = arith.mulf %136, %135 : vector<8x32xf32>
    %138 = arith.truncf %137 : vector<8x32xf32> to vector<8x32xbf16>
    %cst_74 = arith.constant dense<0.000000e+00> : vector<8x32xf32>
    %139 = tpu.matmul %12, %138, %cst_74 {dimension_numbers = #tpu.dot_dimension_numbers<[1], [0], [0], [1], [0, 0, 1, 1], [], []>} : vector<8x8xbf16>, vector<8x32xbf16>, vector<8x32xf32> -> vector<8x32xf32>
    %140 = arith.truncf %139 : vector<8x32xf32> to vector<8x32xbf16>
    %cst_75 = arith.constant dense<0.000000e+00> : vector<8x32xf32>
    %141 = tpu.matmul %14, %140, %cst_75 {dimension_numbers = #tpu.dot_dimension_numbers<[1], [0], [0], [1], [0, 0, 1, 1], [], []>} : vector<8x8xbf16>, vector<8x32xbf16>, vector<8x32xf32> -> vector<8x32xf32>
    %142 = arith.mulf %137, %139 : vector<8x32xf32>
    %cst_76 = arith.constant dense<0.000000e+00> : vector<32xf32>
    %143 = vector.multi_reduction <add>, %142, %cst_76 [0] : vector<8x32xf32> to vector<32xf32>
    %144 = vector.shape_cast %143 : vector<32xf32> to vector<1x32xf32>
    %145 = arith.mulf %139, %139 : vector<8x32xf32>
    %146 = arith.truncf %145 : vector<8x32xf32> to vector<8x32xbf16>
    %cst_77 = arith.constant dense<0.000000e+00> : vector<8x32xf32>
    %147 = tpu.matmul %16, %146, %cst_77 {dimension_numbers = #tpu.dot_dimension_numbers<[1], [0], [0], [1], [0, 0, 1, 1], [], []>} : vector<8x8xbf16>, vector<8x32xbf16>, vector<8x32xf32> -> vector<8x32xf32>
    %cst_78 = arith.constant 1.000000e+00 : f32
    %148 = vector.broadcast %cst_78 : f32 to vector<1x32xf32>
    %149 = arith.subf %148, %144 : vector<1x32xf32>
    %150 = vector.broadcast %149 : vector<1x32xf32> to vector<8x32xf32>
    %151 = arith.addf %150, %147 : vector<8x32xf32>
    %cst_79 = arith.constant 0.000000e+00 : f32
    %152 = vector.broadcast %cst_79 : f32 to vector<8x32xf32>
    %153 = arith.maximumf %151, %152 : vector<8x32xf32>
    %154 = arith.subf %6, %141 : vector<8x32xf32>
    %155 = arith.mulf %154, %154 : vector<8x32xf32>
    %156 = arith.addf %155, %153 : vector<8x32xf32>
    %cst_80 = arith.constant -2.000000e+00 : f32
    %157 = vector.broadcast %cst_80 : f32 to vector<8x32xf32>
    %158 = arith.mulf %157, %156 : vector<8x32xf32>
    %cst_81 = arith.constant -0.22579135 : f32
    %159 = vector.broadcast %cst_81 : f32 to vector<8x32xf32>
    %160 = arith.addf %159, %158 : vector<8x32xf32>
    %cst_82 = arith.constant dense<0.000000e+00> : vector<8xf32>
    %161 = vector.multi_reduction <add>, %160, %cst_82 [1] : vector<8x32xf32> to vector<8xf32>
    %162 = vector.shape_cast %161 : vector<8xf32> to vector<8x1xf32>
    %c0_83 = arith.constant 0 : index
    %c0_84 = arith.constant 0 : index
    %c1_85 = arith.constant 1 : index
    %163 = vector.load %arg10[%c0_83, %c0_84, %c1_85] : memref<1x8x2xf32, #tpu.memory_space<vmem>>, vector<1x8x1xf32>
    %164 = vector.shape_cast %163 : vector<1x8x1xf32> to vector<8x1xf32>
    %165 = arith.addf %164, %162 : vector<8x1xf32>
    %c0_86 = arith.constant 0 : index
    %c0_87 = arith.constant 0 : index
    %c1_88 = arith.constant 1 : index
    %166 = vector.load %arg10[%c0_86, %c0_87, %c1_88] : memref<1x8x2xf32, #tpu.memory_space<vmem>>, vector<1x8x1xf32>
    %167 = vector.shape_cast %166 : vector<1x8x1xf32> to vector<8x1xf32>
    %168 = vector.shape_cast %165 : vector<8x1xf32> to vector<1x8x1xf32>
    tpu.vector_store %arg10[%c0_86, %c0_87, %c1_88], %168 {strides = array<i32>} : memref<1x8x2xf32, #tpu.memory_space<vmem>>, vector<1x8x1xf32>,
    %c0_89 = arith.constant 0 : index
    %c0_90 = arith.constant 0 : index
    %c1_91 = arith.constant 1 : index
    %169 = vector.load %arg11[%c0_89, %c0_90, %c1_91] : memref<1x1x2xf32, #tpu.memory_space<vmem>>, vector<1x1x1xf32>
    %170 = vector.shape_cast %169 : vector<1x1x1xf32> to vector<1x1xf32>
    %171 = arith.addf %170, %119 : vector<1x1xf32>
    %c0_92 = arith.constant 0 : index
    %c0_93 = arith.constant 0 : index
    %c1_94 = arith.constant 1 : index
    %172 = vector.load %arg11[%c0_92, %c0_93, %c1_94] : memref<1x1x2xf32, #tpu.memory_space<vmem>>, vector<1x1x1xf32>
    %173 = vector.shape_cast %172 : vector<1x1x1xf32> to vector<1x1xf32>
    %174 = vector.shape_cast %171 : vector<1x1xf32> to vector<1x1x1xf32>
    tpu.vector_store %arg11[%c0_92, %c0_93, %c1_94], %174 {strides = array<i32>} : memref<1x1x2xf32, #tpu.memory_space<vmem>>, vector<1x1x1xf32>,
    %c0_95 = arith.constant 0 : index
    %c0_96 = arith.constant 0 : index
    %c1_97 = arith.constant 1 : index
    %175 = vector.load %arg12[%c0_95, %c0_96, %c1_97] : memref<1x1x2xf32, #tpu.memory_space<vmem>>, vector<1x1x1xf32>
    %176 = vector.shape_cast %175 : vector<1x1x1xf32> to vector<1x1xf32>
    %177 = arith.addf %176, %123 : vector<1x1xf32>
    %c0_98 = arith.constant 0 : index
    %c0_99 = arith.constant 0 : index
    %c1_100 = arith.constant 1 : index
    %178 = vector.load %arg12[%c0_98, %c0_99, %c1_100] : memref<1x1x2xf32, #tpu.memory_space<vmem>>, vector<1x1x1xf32>
    %179 = vector.shape_cast %178 : vector<1x1x1xf32> to vector<1x1xf32>
    %180 = vector.shape_cast %177 : vector<1x1xf32> to vector<1x1x1xf32>
    tpu.vector_store %arg12[%c0_98, %c0_99, %c1_100], %180 {strides = array<i32>} : memref<1x1x2xf32, #tpu.memory_space<vmem>>, vector<1x1x1xf32>,
    return
  }
  func.func @transform_0(%arg0: i32, %arg1: i32) -> (i32, i32, i32) {
    %c0_i32 = arith.constant 0 : i32
    %c0_i32_0 = arith.constant 0 : i32
    return %arg0, %c0_i32, %arg1 : i32, i32, i32
  }
  func.func @transform_1(%arg0: i32, %arg1: i32) -> (i32, i32) {
    %c0_i32 = arith.constant 0 : i32
    %c0_i32_0 = arith.constant 0 : i32
    return %c0_i32, %arg1 : i32, i32
  }
  func.func @transform_2(%arg0: i32, %arg1: i32) -> (i32, i32) {
    %c0_i32 = arith.constant 0 : i32
    %c0_i32_0 = arith.constant 0 : i32
    return %c0_i32, %arg1 : i32, i32
  }
  func.func @transform_3(%arg0: i32, %arg1: i32) -> (i32, i32) {
    %c0_i32 = arith.constant 0 : i32
    %c0_i32_0 = arith.constant 0 : i32
    return %c0_i32, %arg1 : i32, i32
  }
  func.func @transform_4(%arg0: i32, %arg1: i32) -> (i32, i32) {
    %c0_i32 = arith.constant 0 : i32
    %c0_i32_0 = arith.constant 0 : i32
    %c0_i32_1 = arith.constant 0 : i32
    return %c0_i32, %c0_i32_0 : i32, i32
  }
  func.func @transform_5(%arg0: i32, %arg1: i32) -> (i32, i32) {
    %c0_i32 = arith.constant 0 : i32
    %c0_i32_0 = arith.constant 0 : i32
    %c0_i32_1 = arith.constant 0 : i32
    return %c0_i32, %c0_i32_0 : i32, i32
  }
  func.func @transform_6(%arg0: i32, %arg1: i32) -> (i32, i32) {
    %c0_i32 = arith.constant 0 : i32
    %c0_i32_0 = arith.constant 0 : i32
    %c0_i32_1 = arith.constant 0 : i32
    return %c0_i32, %c0_i32_0 : i32, i32
  }
  func.func @transform_7(%arg0: i32, %arg1: i32) -> (i32, i32) {
    %c0_i32 = arith.constant 0 : i32
    %c0_i32_0 = arith.constant 0 : i32
    %c0_i32_1 = arith.constant 0 : i32
    return %c0_i32, %c0_i32_0 : i32, i32
  }
  func.func @transform_8(%arg0: i32, %arg1: i32) -> (i32, i32, i32) {
    %c0_i32 = arith.constant 0 : i32
    %c0_i32_0 = arith.constant 0 : i32
    %c0_i32_1 = arith.constant 0 : i32
    return %arg0, %c0_i32, %c0_i32_0 : i32, i32, i32
  }
  func.func @transform_9(%arg0: i32, %arg1: i32) -> (i32, i32, i32) {
    %c0_i32 = arith.constant 0 : i32
    %c0_i32_0 = arith.constant 0 : i32
    %c0_i32_1 = arith.constant 0 : i32
    return %arg0, %c0_i32, %c0_i32_0 : i32, i32, i32
  }
  func.func @transform_10(%arg0: i32, %arg1: i32) -> (i32, i32, i32) {
    %c0_i32 = arith.constant 0 : i32
    %c0_i32_0 = arith.constant 0 : i32
    %c0_i32_1 = arith.constant 0 : i32
    return %arg0, %c0_i32, %c0_i32_0 : i32, i32, i32
  }
}

</mosaic_0001>

<llo_original>
// kernel: tpu_custom_call.1
$region0: #{tpu_custom_call.1}
  #allocation0 [shape = 'u32[]', space=smem, size = 0x4, offset = 0x4, fixed_abs, tag = 'smem constant byte address 0x4 - core index']
  #allocation1 [shape = 'u32[144,128]{1,0:T(1,128)}', space=vmem, size = 0x12000, scoped, tag = 'internal scratch']
  %s0 = inlined_call_operand.hbm [shape: f32[8,4,32], index: 0, kind: input, shape index: {}]
  %s1 = inlined_call_operand.hbm [shape: f32[4,32], index: 1, kind: input, shape index: {}]
  %s2 = inlined_call_operand.hbm [shape: f32[4,32], index: 2, kind: input, shape index: {}]
  %s3 = inlined_call_operand.vmem [shape: f32[8,32], index: 3, kind: input, shape index: {}]
  %s4 = inlined_call_operand.vmem [shape: f32[8,4], index: 4, kind: input, shape index: {}]
  %s5 = inlined_call_operand.vmem [shape: f32[8,8], index: 5, kind: input, shape index: {}]
  %s6 = inlined_call_operand.vmem [shape: f32[8,8], index: 6, kind: input, shape index: {}]
  %s7 = inlined_call_operand.vmem [shape: f32[8,8], index: 7, kind: input, shape index: {}]
  %s8 = inlined_call_operand.vmem [shape: f32[4,8,2], index: 8, kind: output, shape index: {0}]
  %s9 = inlined_call_operand.vmem [shape: f32[4,1,2], index: 9, kind: output, shape index: {1}]
  %s10 = inlined_call_operand.vmem [shape: f32[4,1,2], index: 10, kind: output, shape index: {2}]
  %11 = xla_tuple %s8, %s9, %s10
  %s12 = sld [smem:[#allocation0]]
  $region97: #{tpu_custom_call.1} parent=0
    _
  %s14 = ssub.s32 1, %s12
  %s15 = scalar_select 0, %s14, %s12
  $region1: #{tpu_custom_call.1} parent=0
    #allocation2 [shape = 'u8[8192]{0}', space=vmem, size = 0x2000, scoped, tag = 'input window, operand 0']
    #allocation3 [shape = 's32[2]{0}', space=sflag, size = 0x8, scoped, tag = 'scoped memory for tpu_custom_call.1']
    #allocation4 [shape = 'u8[2048]{0}', space=vmem, size = 0x800, scoped, tag = 'input window, operand 1, single buffered']
    #allocation5 [shape = 's32[1]{0}', space=sflag, size = 0x4, scoped, tag = 'scoped memory for tpu_custom_call.1']
    #allocation6 [shape = 'u8[2048]{0}', space=vmem, size = 0x800, scoped, tag = 'input window, operand 2, single buffered']
    %16 = vsyncpa [#allocation3], 0
    %s17 = scalar_lea.sflag [#allocation3], 1
    %18 = vsyncpa %s17, 0
    %19 = vsyncpa [#allocation5], 0
    loop: start=0, step=1, limit=6
    $region2: #{tpu_custom_call.1} parent=1 // loop_pre_header
      _
    $region3: #{tpu_custom_call.1} parent=1 // loop_header
      %s21 = sphi 0, %s25
      %p22 = scmp.ge.s32.totalorder %s21, 6
      %s28 = sphi 0, %s40
      %s29 = sphi 0, %s36
      %s30 = sphi 0, %s28
      %s31 = sphi 0, %s29
      %s32 = sphi 0, %s30
      %s33 = sphi 0, %s31
      %s45 = sphi 0, %s47
      %s48 = sphi 0, %s45
      %s49 = sphi 0, %s48
      %s65 = sphi 0, %s49
      %s71 = sphi 0, %s73
      %s74 = sphi 0, %s71
      %s75 = sphi 0, %s74
      %s91 = sphi 0, %s75
      %s97 = sphi 0, %s99
      %s100 = sphi 0, %s97
      %s101 = sphi 0, %s100
      %s117 = sphi 0, %s101
      %s123 = sphi 0, %s125
      %s126 = sphi 0, %s123
      %s127 = sphi 0, %s126
      %s143 = sphi 0, %s127
      %s147 = sphi 0, %s147
      %s149 = sphi 0, %s147
      %s150 = sphi 0, %s149
      %s164 = sphi 0, %s150
      %s168 = sphi 0, %s168
      %s170 = sphi 0, %s168
      %s171 = sphi 0, %s170
      %s185 = sphi 0, %s171
      %s189 = sphi 0, %s189
      %s191 = sphi 0, %s189
      %s192 = sphi 0, %s191
      %s206 = sphi 0, %s192
      %s210 = sphi 0, %s210
      %s212 = sphi 0, %s210
      %s213 = sphi 0, %s212
      %s227 = sphi 0, %s213
      %s233 = sphi 0, %s235
      %s236 = sphi 0, %s233
      %s237 = sphi 0, %s236
      %s253 = sphi 0, %s237
      %s259 = sphi 0, %s261
      %s262 = sphi 0, %s259
      %s263 = sphi 0, %s262
      %s279 = sphi 0, %s263
      %s285 = sphi 0, %s287
      %s288 = sphi 0, %s285
      %s289 = sphi 0, %s288
      %s305 = sphi 0, %s289
    $region4: #{tpu_custom_call.1} parent=1 // loop_header_branch
      %24 = sbr.rel (%p22) target = $region8
    $region5: #{tpu_custom_call.1} parent=1 // loop_body
      %s26 = ssub.s32 %s21, 1
      %s27 = ssub.s32 %s21, 2
      %s34 = sadd.s32 1, %s29
      %p35 = scmp.ge.s32.totalorder %s34, 1
      %s36 = scalar_select %p35, 0, %s34
      %s37 = sadd.s32 1, %s28
      %s38 = scalar_select %p35, %s37, %s28
      %p39 = scmp.ge.s32.totalorder %s38, 4
      %s40 = scalar_select %p39, 0, %s38
      %s41 = ssub.s32 %s28, %s40
      %s42 = ssub.s32 %s29, %s36
      %s43 = sor.u32 %s41, %s42
      %p44 = scmp.eq.s32.totalorder %s43, 0
      %s46 = sadd.s32 %s45, 1
      %s47 = scalar_select %p44, %s45, %s46
      %p50 = pneg %p44
      %p51 = scmp.eq.s32.totalorder %s21, 3
      %p52 = por %p50, %p51
      %p53 = scmp.ne.s32.totalorder %s45, %s48
      %p54 = scmp.eq.s32.totalorder %s21, 0
      %p55 = por %p53, %p54
      %p56 = scmp.ne.s32.totalorder %s45, %s48
      %p57 = scmp.eq.s32.totalorder %s26, 3
      %p58 = por %p56, %p57
      %p59 = scmp.ne.s32.totalorder %s48, %s49
      %p60 = scmp.eq.s32.totalorder %s26, 0
      %p61 = por %p59, %p60
      %p62 = scmp.ne.s32.totalorder %s48, %s49
      %p63 = scmp.eq.s32.totalorder %s27, 3
      %p64 = por %p62, %p63
      %p66 = scmp.ne.s32.totalorder %s49, %s65
      %p67 = scmp.eq.s32.totalorder %s27, 0
      %p68 = por %p66, %p67
      %s69 = ssub.s32 %s29, %s36
      %p70 = scmp.eq.s32.totalorder %s69, 0
      %s72 = sadd.s32 %s71, 1
      %s73 = scalar_select %p70, %s71, %s72
      %p76 = pneg %p70
      %p77 = scmp.eq.s32.totalorder %s21, 3
      %p78 = por %p76, %p77
      %p79 = scmp.ne.s32.totalorder %s71, %s74
      %p80 = scmp.eq.s32.totalorder %s21, 0
      %p81 = por %p79, %p80
      %p82 = scmp.ne.s32.totalorder %s71, %s74
      %p83 = scmp.eq.s32.totalorder %s26, 3
      %p84 = por %p82, %p83
      %p85 = scmp.ne.s32.totalorder %s74, %s75
      %p86 = scmp.eq.s32.totalorder %s26, 0
      %p87 = por %p85, %p86
      %p88 = scmp.ne.s32.totalorder %s74, %s75
      %p89 = scmp.eq.s32.totalorder %s27, 3
      %p90 = por %p88, %p89
      %p92 = scmp.ne.s32.totalorder %s75, %s91
      %p93 = scmp.eq.s32.totalorder %s27, 0
      %p94 = por %p92, %p93
      %s95 = ssub.s32 %s29, %s36
      %p96 = scmp.eq.s32.totalorder %s95, 0
      %s98 = sadd.s32 %s97, 1
      %s99 = scalar_select %p96, %s97, %s98
      %p102 = pneg %p96
      %p103 = scmp.eq.s32.totalorder %s21, 3
      %p104 = por %p102, %p103
      %p105 = scmp.ne.s32.totalorder %s97, %s100
      %p106 = scmp.eq.s32.totalorder %s21, 0
      %p107 = por %p105, %p106
      %p108 = scmp.ne.s32.totalorder %s97, %s100
      %p109 = scmp.eq.s32.totalorder %s26, 3
      %p110 = por %p108, %p109
      %p111 = scmp.ne.s32.totalorder %s100, %s101
      %p112 = scmp.eq.s32.totalorder %s26, 0
      %p113 = por %p111, %p112
      %p114 = scmp.ne.s32.totalorder %s100, %s101
      %p115 = scmp.eq.s32.totalorder %s27, 3
      %p116 = por %p114, %p115
      %p118 = scmp.ne.s32.totalorder %s101, %s117
      %p119 = scmp.eq.s32.totalorder %s27, 0
      %p120 = por %p118, %p119
      %s121 = ssub.s32 %s29, %s36
      %p122 = scmp.eq.s32.totalorder %s121, 0
      %s124 = sadd.s32 %s123, 1
      %s125 = scalar_select %p122, %s123, %s124
      %p128 = pneg %p122
      %p129 = scmp.eq.s32.totalorder %s21, 3
      %p130 = por %p128, %p129
      %p131 = scmp.ne.s32.totalorder %s123, %s126
      %p132 = scmp.eq.s32.totalorder %s21, 0
      %p133 = por %p131, %p132
      %p134 = scmp.ne.s32.totalorder %s123, %s126
      %p135 = scmp.eq.s32.totalorder %s26, 3
      %p136 = por %p134, %p135
      %p137 = scmp.ne.s32.totalorder %s126, %s127
      %p138 = scmp.eq.s32.totalorder %s26, 0
      %p139 = por %p137, %p138
      %p140 = scmp.ne.s32.totalorder %s126, %s127
      %p141 = scmp.eq.s32.totalorder %s27, 3
      %p142 = por %p140, %p141
      %p144 = scmp.ne.s32.totalorder %s127, %s143
      %p145 = scmp.eq.s32.totalorder %s27, 0
      %p146 = por %p144, %p145
      %s148 = sadd.s32 %s147, 1
      %p151 = scmp.eq.s32.totalorder %s21, 3
      %p152 = scmp.ne.s32.totalorder %s147, %s149
      %p153 = scmp.eq.s32.totalorder %s21, 0
      %p154 = por %p152, %p153
      %p155 = scmp.ne.s32.totalorder %s147, %s149
      %p156 = scmp.eq.s32.totalorder %s26, 3
      %p157 = por %p155, %p156
      %p158 = scmp.ne.s32.totalorder %s149, %s150
      %p159 = scmp.eq.s32.totalorder %s26, 0
      %p160 = por %p158, %p159
      %p161 = scmp.ne.s32.totalorder %s149, %s150
      %p162 = scmp.eq.s32.totalorder %s27, 3
      %p163 = por %p161, %p162
      %p165 = scmp.ne.s32.totalorder %s150, %s164
      %p166 = scmp.eq.s32.totalorder %s27, 0
      %p167 = por %p165, %p166
      %s169 = sadd.s32 %s168, 1
      %p172 = scmp.eq.s32.totalorder %s21, 3
      %p173 = scmp.ne.s32.totalorder %s168, %s170
      %p174 = scmp.eq.s32.totalorder %s21, 0
      %p175 = por %p173, %p174
      %p176 = scmp.ne.s32.totalorder %s168, %s170
      %p177 = scmp.eq.s32.totalorder %s26, 3
      %p178 = por %p176, %p177
      %p179 = scmp.ne.s32.totalorder %s170, %s171
      %p180 = scmp.eq.s32.totalorder %s26, 0
      %p181 = por %p179, %p180
      %p182 = scmp.ne.s32.totalorder %s170, %s171
      %p183 = scmp.eq.s32.totalorder %s27, 3
      %p184 = por %p182, %p183
      %p186 = scmp.ne.s32.totalorder %s171, %s185
      %p187 = scmp.eq.s32.totalorder %s27, 0
      %p188 = por %p186, %p187
      %s190 = sadd.s32 %s189, 1
      %p193 = scmp.eq.s32.totalorder %s21, 3
      %p194 = scmp.ne.s32.totalorder %s189, %s191
      %p195 = scmp.eq.s32.totalorder %s21, 0
      %p196 = por %p194, %p195
      %p197 = scmp.ne.s32.totalorder %s189, %s191
      %p198 = scmp.eq.s32.totalorder %s26, 3
      %p199 = por %p197, %p198
      %p200 = scmp.ne.s32.totalorder %s191, %s192
      %p201 = scmp.eq.s32.totalorder %s26, 0
      %p202 = por %p200, %p201
      %p203 = scmp.ne.s32.totalorder %s191, %s192
      %p204 = scmp.eq.s32.totalorder %s27, 3
      %p205 = por %p203, %p204
      %p207 = scmp.ne.s32.totalorder %s192, %s206
      %p208 = scmp.eq.s32.totalorder %s27, 0
      %p209 = por %p207, %p208
      %s211 = sadd.s32 %s210, 1
      %p214 = scmp.eq.s32.totalorder %s21, 3
      %p215 = scmp.ne.s32.totalorder %s210, %s212
      %p216 = scmp.eq.s32.totalorder %s21, 0
      %p217 = por %p215, %p216
      %p218 = scmp.ne.s32.totalorder %s210, %s212
      %p219 = scmp.eq.s32.totalorder %s26, 3
      %p220 = por %p218, %p219
      %p221 = scmp.ne.s32.totalorder %s212, %s213
      %p222 = scmp.eq.s32.totalorder %s26, 0
      %p223 = por %p221, %p222
      %p224 = scmp.ne.s32.totalorder %s212, %s213
      %p225 = scmp.eq.s32.totalorder %s27, 3
      %p226 = por %p224, %p225
      %p228 = scmp.ne.s32.totalorder %s213, %s227
      %p229 = scmp.eq.s32.totalorder %s27, 0
      %p230 = por %p228, %p229
      %s231 = ssub.s32 %s28, %s40
      %p232 = scmp.eq.s32.totalorder %s231, 0
      %s234 = sadd.s32 %s233, 1
      %s235 = scalar_select %p232, %s233, %s234
      %p238 = pneg %p232
      %p239 = scmp.eq.s32.totalorder %s21, 3
      %p240 = por %p238, %p239
      %p241 = scmp.ne.s32.totalorder %s233, %s236
      %p242 = scmp.eq.s32.totalorder %s21, 0
      %p243 = por %p241, %p242
      %p244 = scmp.ne.s32.totalorder %s233, %s236
      %p245 = scmp.eq.s32.totalorder %s26, 3
      %p246 = por %p244, %p245
      %p247 = scmp.ne.s32.totalorder %s236, %s237
      %p248 = scmp.eq.s32.totalorder %s26, 0
      %p249 = por %p247, %p248
      %p250 = scmp.ne.s32.totalorder %s236, %s237
      %p251 = scmp.eq.s32.totalorder %s27, 3
      %p252 = por %p250, %p251
      %p254 = scmp.ne.s32.totalorder %s237, %s253
      %p255 = scmp.eq.s32.totalorder %s27, 0
      %p256 = por %p254, %p255
      %s257 = ssub.s32 %s28, %s40
      %p258 = scmp.eq.s32.totalorder %s257, 0
      %s260 = sadd.s32 %s259, 1
      %s261 = scalar_select %p258, %s259, %s260
      %p264 = pneg %p258
      %p265 = scmp.eq.s32.totalorder %s21, 3
      %p266 = por %p264, %p265
      %p267 = scmp.ne.s32.totalorder %s259, %s262
      %p268 = scmp.eq.s32.totalorder %s21, 0
      %p269 = por %p267, %p268
      %p270 = scmp.ne.s32.totalorder %s259, %s262
      %p271 = scmp.eq.s32.totalorder %s26, 3
      %p272 = por %p270, %p271
      %p273 = scmp.ne.s32.totalorder %s262, %s263
      %p274 = scmp.eq.s32.totalorder %s26, 0
      %p275 = por %p273, %p274
      %p276 = scmp.ne.s32.totalorder %s262, %s263
      %p277 = scmp.eq.s32.totalorder %s27, 3
      %p278 = por %p276, %p277
      %p280 = scmp.ne.s32.totalorder %s263, %s279
      %p281 = scmp.eq.s32.totalorder %s27, 0
      %p282 = por %p280, %p281
      %s283 = ssub.s32 %s28, %s40
      %p284 = scmp.eq.s32.totalorder %s283, 0
      %s286 = sadd.s32 %s285, 1
      %s287 = scalar_select %p284, %s285, %s286
      %p290 = pneg %p284
      %p291 = scmp.eq.s32.totalorder %s21, 3
      %p292 = por %p290, %p291
      %p293 = scmp.ne.s32.totalorder %s285, %s288
      %p294 = scmp.eq.s32.totalorder %s21, 0
      %p295 = por %p293, %p294
      %p296 = scmp.ne.s32.totalorder %s285, %s288
      %p297 = scmp.eq.s32.totalorder %s26, 3
      %p298 = por %p296, %p297
      %p299 = scmp.ne.s32.totalorder %s288, %s289
      %p300 = scmp.eq.s32.totalorder %s26, 0
      %p301 = por %p299, %p300
      %p302 = scmp.ne.s32.totalorder %s288, %s289
      %p303 = scmp.eq.s32.totalorder %s27, 3
      %p304 = por %p302, %p303
      %p306 = scmp.ne.s32.totalorder %s289, %s305
      %p307 = scmp.eq.s32.totalorder %s27, 0
      %p308 = por %p306, %p307
      %p309 = scmp.le.s32.totalorder 1, %s21
      %p310 = scmp.lt.s32.totalorder %s21, 5
      %p311 = pnand %p309, %p310
      %p312 = pneg %p311
      // Predicated region
      $region9: #{tpu_custom_call.1} parent=5 // pred_check
        _
      $region10: #{tpu_custom_call.1} parent=5 // pred_check_branch
        %314 = sbr.rel (%p311) target = $region12
      $region11: #{tpu_custom_call.1} parent=5 // pred_region
        %s315 = ssub.s32 %s21, 1
        // Predicated region
        $region13: #{tpu_custom_call.1} parent=11 // pred_check
          %p316 = pneg %p87
        $region14: #{tpu_custom_call.1} parent=11 // pred_check_branch
          %318 = sbr.rel (%p316) target = $region16
        $region15: #{tpu_custom_call.1} parent=11 // pred_region
          %s320 = ssub.s32 64, 64
          %321 = vsyncadd [#allocation5], %s320
          %s322 = smul.addr %s31, 64
          %s323 = scalar_lea.hbm %s1, %s322
          %s325 = sshll.u32 [#allocation4], 4
          %s326 = int_to_ptr.vmem [resolvable:$true] %s325
          %328 = dma.hbm_to_vmem [thread:$0]  %s323, 64, %s326, [#allocation5]
        $region16: #{tpu_custom_call.1} parent=11 // pred_fallthru
          _
        // Predicated region
        $region17: #{tpu_custom_call.1} parent=11 // pred_check
          %p329 = pneg %p113
        $region18: #{tpu_custom_call.1} parent=11 // pred_check_branch
          %331 = sbr.rel (%p329) target = $region20
        $region19: #{tpu_custom_call.1} parent=11 // pred_region
          %s333 = ssub.s32 64, 64
          %334 = vsyncadd [#allocation5], %s333
          %s335 = smul.addr %s31, 64
          %s336 = scalar_lea.hbm %s2, %s335
          %s338 = sshll.u32 [#allocation6], 4
          %s339 = int_to_ptr.vmem [resolvable:$true] %s338
          %341 = dma.hbm_to_vmem [thread:$0]  %s336, 64, %s339, [#allocation5]
        $region20: #{tpu_custom_call.1} parent=11 // pred_fallthru
          _
        // Predicated region
        $region21: #{tpu_custom_call.1} parent=11 // pred_check
          %p342 = pneg %p139
        $region22: #{tpu_custom_call.1} parent=11 // pred_check_branch
          %344 = sbr.rel (%p342) target = $region24
        $region23: #{tpu_custom_call.1} parent=11 // pred_region
          %p345 = scmp.lt.s32.totalorder %s31, 0
          %s346 = scalar_select %p345, %s31, 0
          %s347 = smul.addr %s346, 8
          %s348 = scalar_lea.vmem %s3, %s347
        $region24: #{tpu_custom_call.1} parent=11 // pred_fallthru
          _
        // Predicated region
        $region25: #{tpu_custom_call.1} parent=11 // pred_check
          %p349 = pneg %p160
        $region26: #{tpu_custom_call.1} parent=11 // pred_check_branch
          %351 = sbr.rel (%p349) target = $region28
        $region27: #{tpu_custom_call.1} parent=11 // pred_region
          _
        $region28: #{tpu_custom_call.1} parent=11 // pred_fallthru
          _
        // Predicated region
        $region29: #{tpu_custom_call.1} parent=11 // pred_check
          %p352 = pneg %p181
        $region30: #{tpu_custom_call.1} parent=11 // pred_check_branch
          %354 = sbr.rel (%p352) target = $region32
        $region31: #{tpu_custom_call.1} parent=11 // pred_region
          _
        $region32: #{tpu_custom_call.1} parent=11 // pred_fallthru
          _
        // Predicated region
        $region33: #{tpu_custom_call.1} parent=11 // pred_check
          %p355 = pneg %p202
        $region34: #{tpu_custom_call.1} parent=11 // pred_check_branch
          %357 = sbr.rel (%p355) target = $region36
        $region35: #{tpu_custom_call.1} parent=11 // pred_region
          _
        $region36: #{tpu_custom_call.1} parent=11 // pred_fallthru
          _
        // Predicated region
        $region37: #{tpu_custom_call.1} parent=11 // pred_check
          %p358 = pneg %p223
        $region38: #{tpu_custom_call.1} parent=11 // pred_check_branch
          %360 = sbr.rel (%p358) target = $region40
        $region39: #{tpu_custom_call.1} parent=11 // pred_region
          _
        $region40: #{tpu_custom_call.1} parent=11 // pred_fallthru
          _
      $region12: #{tpu_custom_call.1} parent=5 // pred_fallthru
        _
      %p361 = scmp.lt.s32.totalorder %s21, 4
      // Predicated region
      $region41: #{tpu_custom_call.1} parent=5 // pred_check
        %p362 = pneg %p361
      $region42: #{tpu_custom_call.1} parent=5 // pred_check_branch
        %364 = sbr.rel (%p362) target = $region44
      $region43: #{tpu_custom_call.1} parent=5 // pred_region
        // Predicated region
        $region45: #{tpu_custom_call.1} parent=43 // pred_check
          %p365 = pneg %p55
        $region46: #{tpu_custom_call.1} parent=43 // pred_check_branch
          %367 = sbr.rel (%p365) target = $region48
        $region47: #{tpu_custom_call.1} parent=43 // pred_region
          %s368 = sand.u32 %s45, 1
          %s369 = scalar_lea.sflag [#allocation3], %s368
          %s370 = sand.u32 %s45, 1
          %s371 = smul.addr %s370, 8
          %s372 = scalar_lea.vmem [#allocation2], %s371
          %s373 = smul.u32 2, %s28
          %s375 = ssub.s32 128, 128
          %376 = vsyncadd %s369, %s375
          %s377 = sadd.s32 %s29, %s373
          %s378 = smul.addr %s377, 64
          %s379 = scalar_lea.hbm %s0, %s378
          %s380 = sshll.u32 %s372, 4
          %s381 = int_to_ptr.vmem [resolvable:$true] %s380
          %386 = dma.hbm_to_vmem [thread:$0]  %s379, 128, %s381, %s369, 64, 64, 4
        $region48: #{tpu_custom_call.1} parent=43 // pred_fallthru
          _
      $region44: #{tpu_custom_call.1} parent=5 // pred_fallthru
        _
      %p387 = scmp.le.s32.totalorder 1, %s21
      %p388 = scmp.lt.s32.totalorder %s21, 5
      %p389 = pnand %p387, %p388
      %p390 = pneg %p389
      // Predicated region
      $region49: #{tpu_custom_call.1} parent=5 // pred_check
        _
      $region50: #{tpu_custom_call.1} parent=5 // pred_check_branch
        %392 = sbr.rel (%p389) target = $region52
      $region51: #{tpu_custom_call.1} parent=5 // pred_region
        %s393 = ssub.s32 %s21, 1
        %s394 = sand.u32 %s48, 1
        %s395 = scalar_lea.sflag [#allocation3], %s394
        %s396 = sand.u32 %s48, 1
        %s397 = smul.addr %s396, 8
        %s398 = scalar_lea.vmem [#allocation2], %s397
        // Predicated region
        $region53: #{tpu_custom_call.1} parent=51 // pred_check
          %p399 = pneg %p61
        $region54: #{tpu_custom_call.1} parent=51 // pred_check_branch
          %401 = sbr.rel (%p399) target = $region56
        $region55: #{tpu_custom_call.1} parent=51 // pred_region
          %402 = dma.done %s395, 128
        $region56: #{tpu_custom_call.1} parent=51 // pred_fallthru
          _
        // Predicated region
        $region57: #{tpu_custom_call.1} parent=51 // pred_check
          %p403 = pneg %p87
        $region58: #{tpu_custom_call.1} parent=51 // pred_check_branch
          %405 = sbr.rel (%p403) target = $region60
        $region59: #{tpu_custom_call.1} parent=51 // pred_region
          %406 = dma.done [#allocation5], 64
        $region60: #{tpu_custom_call.1} parent=51 // pred_fallthru
          _
        // Predicated region
        $region61: #{tpu_custom_call.1} parent=51 // pred_check
          %p407 = pneg %p113
        $region62: #{tpu_custom_call.1} parent=51 // pred_check_branch
          %409 = sbr.rel (%p407) target = $region64
        $region63: #{tpu_custom_call.1} parent=51 // pred_region
          %410 = dma.done [#allocation5], 64
        $region64: #{tpu_custom_call.1} parent=51 // pred_fallthru
          _
        %s411 = sand.u32 %s48, 1
        %s412 = scalar_lea.sflag [#allocation3], %s411
        %s413 = sand.u32 %s48, 1
        %s414 = smul.addr %s413, 8
        %s415 = scalar_lea.vmem [#allocation2], %s414
        %p416 = pneg %p61
        %p417 = pneg %p58
        %p418 = pneg %p87
        %p419 = pneg %p84
        %p420 = pneg %p113
        %p421 = pneg %p110
        %p422 = scmp.lt.s32.totalorder %s31, 0
        %s423 = scalar_select %p422, %s31, 0
        %s424 = smul.addr %s423, 8
        %s425 = scalar_lea.vmem %s3, %s424
        %p426 = pneg %p139
        %p427 = pneg %p136
        %p428 = pneg %p160
        %p429 = pneg %p157
        %p430 = pneg %p181
        %p431 = pneg %p178
        %p432 = pneg %p202
        %p433 = pneg %p199
        %p434 = pneg %p223
        %p435 = pneg %p220
        %p436 = pneg %p249
        %p437 = pneg %p246
        %p438 = scmp.lt.s32.totalorder %s30, 3
        %s439 = scalar_select %p438, %s30, 3
        %s440 = smul.addr %s439, 8
        %s441 = scalar_lea.vmem %s8, %s440
        %p442 = pneg %p275
        %p443 = pneg %p272
        %p444 = scmp.lt.s32.totalorder %s30, 3
        %s445 = scalar_select %p444, %s30, 3
        %s446 = scalar_lea.vmem %s9, %s445
        %p447 = pneg %p301
        %p448 = pneg %p298
        %p449 = scmp.lt.s32.totalorder %s30, 3
        %s450 = scalar_select %p449, %s30, 3
        %s451 = scalar_lea.vmem %s10, %s450
        %s452 = smul.u32 2, %s30
        %p453 = scmp.lt.s32.totalorder %s31, 0
        %s454 = scalar_select %p453, %s31, 0
        %s455 = smul.addr %s454, 8
        %s456 = scalar_lea.vmem %s3, %s455
        %p457 = scmp.lt.s32.totalorder %s30, 3
        %s458 = scalar_select %p457, %s30, 3
        %s459 = smul.addr %s458, 8
        %s460 = scalar_lea.vmem %s8, %s459
        %p461 = scmp.lt.s32.totalorder %s30, 3
        %s462 = scalar_select %p461, %s30, 3
        %s463 = scalar_lea.vmem %s9, %s462
        %p464 = scmp.lt.s32.totalorder %s30, 3
        %s465 = scalar_select %p464, %s30, 3
        %s466 = scalar_lea.vmem %s10, %s465
        %p468 = scmp.eq.s32.totalorder %s31, 0
        // Predicated region
        $region65: #{tpu_custom_call.1} parent=51 // pred_check
          %p469 = pneg %p468
        $region66: #{tpu_custom_call.1} parent=51 // pred_check_branch
          %471 = sbr.rel (%p469) target = $region68
        $region67: #{tpu_custom_call.1} parent=51 // pred_region
          %vm472 = vcmask 15360
          %473 = vst.msk [vmem:[%s460] sm:$0xff] %vm472, 0.0
          %vm474 = vcmask 8192
          %475 = vst.msk [vmem:[%s463] sm:$0x1] %vm474, 0.0
          %476 = vst.msk [vmem:[%s466] sm:$0x1] %vm474, 0.0
        $region68: #{tpu_custom_call.1} parent=51 // pred_fallthru
          _
        %v477 = vld [vmem:[#allocation4] sm:$0xf]
        %v478 = vld [vmem:[#allocation6] sm:$0xf]
        %v479 = vmul.f32 %v478, 1.442695
        %v480 = vpow.pop %v479
        %v481 = vld [vmem:[%s456] sm:$0xff]
        %v482 = vld [vmem:[%s4] sm:$0xff]
        %v483 = vmul.f32 %v482, %v482
        %vm484 = vcmask 31744
        %v485 = vsel %vm484, %v483, 0.0
        %486 = vadd.xlane.f32.xlu0 %v485
        %v487 = vpop.xlane.xlu0 %486
        %v488 = vld [vmem:[%s5] sm:$0xff]
        %v489 = vpack.c.bf16 %v488, %v488
        %v490 = vld [vmem:[%s6] sm:$0xff]
        %v491 = vpack.c.bf16 %v490, %v490
        %v492 = vld [vmem:[%s7] sm:$0xff]
        %v493 = vpack.c.bf16 %v492, %v492
        %vm494 = vcmask 257024
        %v495 = vsel %vm494, %v478, 0.0
        %496 = vadd.xlane.f32.xlu0 %v495
        %v497 = vpop.xlane.xlu0 %496
        %vm498 = vcmask 1043456
        %v499 = vsel %vm498, %v497, 0.0
        %v500 = vrot.slane %v499, 4
        %v501 = vadd.f32 %v499, %v500
        %v502 = vrot.slane %v501, 2
        %v503 = vadd.f32 %v501, %v502
        %v504 = vrot.slane %v503, 1
        %v505 = vadd.f32 %v503, %v504
        %v506 = vld [vmem:[%s398] sm:$0xf]
        %v507 = vmul.f32 %v480, %v506
        %v508 = vadd.f32 %v477, %v507
        %v509 = vmul.f32 %v506, %v506
        %v510 = vsel %vm494, %v509, 0.0
        %511 = vadd.xlane.f32.xlu0 %v510
        %v512 = vpop.xlane.xlu0 %511
        %v513 = vsel %vm498, %v512, 0.0
        %v514 = vrot.slane %v513, 4
        %v515 = vadd.f32 %v513, %v514
        %v516 = vrot.slane %v515, 2
        %v517 = vadd.f32 %v515, %v516
        %v518 = vrot.slane %v517, 1
        %v519 = vadd.f32 %v517, %v518
        %v520 = vmul.f32 %v508, %v508
        %v521 = vsel %vm494, %v520, 0.0
        %v522 = vrot.slane %v521, 4
        %v523 = vadd.f32 %v521, %v522
        %v524 = vrot.slane %v523, 2
        %v525 = vadd.f32 %v523, %v524
        %v526 = vrot.slane %v525, 1
        %v527 = vadd.f32 %v525, %v526
        %vm528 = vcmask 261120
        %v529 = vsel %vm528, %v527, 0.0
        %530 = vadd.xlane.f32.xlu0 %v529
        %v531 = vpop.xlane.xlu0 %530
        %v532 = vsub.f32 -117.62413, %v505
        %v533 = vmul.f32 %v519, 0.5
        %v534 = vsub.f32 %v532, %v533
        %v535 = vmul.f32 %v531, 0.5
        %v536 = vsub.f32 -117.62413, %v535
        %v538 = vsel %vm484, %v482, 0
        %v541 = vsel %vm498, %v508, 0
        %543 = vmatprep.subr.mxu0 0.0
        %544 = vmatpush1.msra.mxu0 %v541
        %545 = vmatprep.subr.mxu0 0.0
        %546 = vmatpush1.msra.mxu0 0.0
        %547 = vmatprep.subr.mxu0 0.0
        %548 = vmatpush1.msra.mxu0 0.0
        %549 = vmatprep.subr.mxu0 0.0
        %550 = vmatpush1.msra.mxu0 0.0
        %551 = vmatprep.subr.mxu0 0.0
        %552 = vmatpush1.msra.mxu0 0.0
        %553 = vmatprep.subr.mxu0 0.0
        %554 = vmatpush1.msra.mxu0 0.0
        %555 = vmatprep.subr.mxu0 0.0
        %556 = vmatpush1.msra.mxu0 0.0
        %557 = vmatprep.subr.mxu0 0.0
        %558 = vmatpush1.msra.mxu0 0.0
        %559 = vmatprep.subr.mxu0 0.0
        %560 = vmatpush1.msra.mxu0 0.0
        %561 = vmatprep.subr.mxu0 0.0
        %562 = vmatpush1.msra.mxu0 0.0
        %563 = vmatprep.subr.mxu0 0.0
        %564 = vmatpush1.msra.mxu0 0.0
        %565 = vmatprep.subr.mxu0 0.0
        %566 = vmatpush1.msra.mxu0 0.0
        %567 = vmatprep.subr.mxu0 0.0
        %568 = vmatpush1.msra.mxu0 0.0
        %569 = vmatprep.subr.mxu0 0.0
        %570 = vmatpush1.msra.mxu0 0.0
        %571 = vmatprep.subr.mxu0 0.0
        %572 = vmatpush1.msra.mxu0 0.0
        %573 = vmatprep.subr.mxu0 0.0
        %574 = vmatpush1.msra.mxu0 0.0
        %575 = vmatprep.subr.mxu0 0.0
        %576 = vmatpush1.msra.mxu0 0.0
        %577 = vmatprep.subr.mxu0 0.0
        %578 = vmatpush1.msra.mxu0 0.0
        %579 = vmatprep.subr.mxu0 0.0
        %580 = vmatpush1.msra.mxu0 0.0
        %581 = vmatprep.subr.mxu0 0.0
        %582 = vmatpush1.msra.mxu0 0.0
        %583 = vmatprep.subr.mxu0 0.0
        %584 = vmatpush1.msra.mxu0 0.0
        %585 = vmatprep.subr.mxu0 0.0
        %586 = vmatpush1.msra.mxu0 0.0
        %587 = vmatprep.subr.mxu0 0.0
        %588 = vmatpush1.msra.mxu0 0.0
        %589 = vmatprep.subr.mxu0 0.0
        %590 = vmatpush1.msra.mxu0 0.0
        %591 = vmatprep.subr.mxu0 0.0
        %592 = vmatpush1.msra.mxu0 0.0
        %593 = vmatprep.subr.mxu0 0.0
        %594 = vmatpush1.msra.mxu0 0.0
        %595 = vmatprep.subr.mxu0 0.0
        %596 = vmatpush1.msra.mxu0 0.0
        %597 = vmatprep.subr.mxu0 0.0
        %598 = vmatpush1.msra.mxu0 0.0
        %599 = vmatprep.subr.mxu0 0.0
        %600 = vmatpush1.msra.mxu0 0.0
        %601 = vmatprep.subr.mxu0 0.0
        %602 = vmatpush1.msra.mxu0 0.0
        %603 = vmatprep.subr.mxu0 0.0
        %604 = vmatpush1.msra.mxu0 0.0
        %605 = vmatprep.subr.mxu0 0.0
        %606 = vmatpush1.msra.mxu0 0.0
        %607 = vmatprep.mubr.f32.mxu0 0.0
        %608 = vmatmul.mubr.f32.gmra.mrb[0].mxu0 %v538
        %v609 = vpop.f32.mrb[0].mxu0
        %v610 = vadd.f32 0.0, %v609
        %v611 = vpop.f32.mrb[0].mxu0
        %612 = vdwg.mxu0
        %v613 = vadd.f32 %v487, %v527
        %v614 = vmul.f32 %v610, 2.0
        %v615 = vsub.f32 %v613, %v614
        %v616 = vmax.f32 %v615, 0.0
        %v617 = vmul.f32 %v616, -0.22222222
        %v618 = vmul.f32 %v617, 1.442695
        %v619 = vpow.pop %v618
        %v620 = vpack.c.bf16 %v619, %v619
        %vm621 = vcmask 64512
        %v623 = vsel %vm621, %v489, 0
        %v626 = vsel %vm498, %v620, 0
        %628 = vmatprep.subr.bf16.mxu0 0
        %629 = vmatpush1.bf16.msra.mxu0 %v626
        %630 = vmatprep.subr.bf16.mxu0 0
        %631 = vmatpush1.bf16.msra.mxu0 0
        %632 = vmatprep.subr.bf16.mxu0 0
        %633 = vmatpush1.bf16.msra.mxu0 0
        %634 = vmatprep.subr.bf16.mxu0 0
        %635 = vmatpush1.bf16.msra.mxu0 0
        %636 = vmatprep.subr.bf16.mxu0 0
        %637 = vmatpush1.bf16.msra.mxu0 0
        %638 = vmatprep.subr.bf16.mxu0 0
        %639 = vmatpush1.bf16.msra.mxu0 0
        %640 = vmatprep.subr.bf16.mxu0 0
        %641 = vmatpush1.bf16.msra.mxu0 0
        %642 = vmatprep.subr.bf16.mxu0 0
        %643 = vmatpush1.bf16.msra.mxu0 0
        %644 = vmatprep.subr.bf16.mxu0 0
        %645 = vmatpush1.bf16.msra.mxu0 0
        %646 = vmatprep.subr.bf16.mxu0 0
        %647 = vmatpush1.bf16.msra.mxu0 0
        %648 = vmatprep.subr.bf16.mxu0 0
        %649 = vmatpush1.bf16.msra.mxu0 0
        %650 = vmatprep.subr.bf16.mxu0 0
        %651 = vmatpush1.bf16.msra.mxu0 0
        %652 = vmatprep.subr.bf16.mxu0 0
        %653 = vmatpush1.bf16.msra.mxu0 0
        %654 = vmatprep.subr.bf16.mxu0 0
        %655 = vmatpush1.bf16.msra.mxu0 0
        %656 = vmatprep.subr.bf16.mxu0 0
        %657 = vmatpush1.bf16.msra.mxu0 0
        %658 = vmatprep.subr.bf16.mxu0 0
        %659 = vmatpush1.bf16.msra.mxu0 0
        %660 = vmatprep.mubr.bf16.mxu0 0
        %661 = vmatmul.mubr.bf16.gmra.mrb[0].mxu0 %v623
        %v662 = vpop.f32.mrb[0].mxu0
        %v663 = vadd.f32 0.0, %v662
        %v664 = vpop.f32.mrb[0].mxu0
        %v665 = vpop.f32.mrb[0].mxu0
        %v666 = vpop.f32.mrb[0].mxu0
        %667 = vdwg.mxu0
        %v668 = vpack.c.bf16 %v663, %v663
        %v670 = vsel %vm621, %v491, 0
        %v673 = vsel %vm498, %v668, 0
        %675 = vmatprep.subr.bf16.mxu0 0
        %676 = vmatpush1.bf16.msra.mxu0 %v673
        %677 = vmatprep.subr.bf16.mxu0 0
        %678 = vmatpush1.bf16.msra.mxu0 0
        %679 = vmatprep.subr.bf16.mxu0 0
        %680 = vmatpush1.bf16.msra.mxu0 0
        %681 = vmatprep.subr.bf16.mxu0 0
        %682 = vmatpush1.bf16.msra.mxu0 0
        %683 = vmatprep.subr.bf16.mxu0 0
        %684 = vmatpush1.bf16.msra.mxu0 0
        %685 = vmatprep.subr.bf16.mxu0 0
        %686 = vmatpush1.bf16.msra.mxu0 0
        %687 = vmatprep.subr.bf16.mxu0 0
        %688 = vmatpush1.bf16.msra.mxu0 0
        %689 = vmatprep.subr.bf16.mxu0 0
        %690 = vmatpush1.bf16.msra.mxu0 0
        %691 = vmatprep.subr.bf16.mxu0 0
        %692 = vmatpush1.bf16.msra.mxu0 0
        %693 = vmatprep.subr.bf16.mxu0 0
        %694 = vmatpush1.bf16.msra.mxu0 0
        %695 = vmatprep.subr.bf16.mxu0 0
        %696 = vmatpush1.bf16.msra.mxu0 0
        %697 = vmatprep.subr.bf16.mxu0 0
        %698 = vmatpush1.bf16.msra.mxu0 0
        %699 = vmatprep.subr.bf16.mxu0 0
        %700 = vmatpush1.bf16.msra.mxu0 0
        %701 = vmatprep.subr.bf16.mxu0 0
        %702 = vmatpush1.bf16.msra.mxu0 0
        %703 = vmatprep.subr.bf16.mxu0 0
        %704 = vmatpush1.bf16.msra.mxu0 0
        %705 = vmatprep.subr.bf16.mxu0 0
        %706 = vmatpush1.bf16.msra.mxu0 0
        %707 = vmatprep.mubr.bf16.mxu0 0
        %708 = vmatmul.mubr.bf16.gmra.mrb[0].mxu0 %v670
        %v709 = vpop.f32.mrb[0].mxu0
        %v710 = vadd.f32 0.0, %v709
        %v711 = vpop.f32.mrb[0].mxu0
        %v712 = vpop.f32.mrb[0].mxu0
        %v713 = vpop.f32.mrb[0].mxu0
        %714 = vdwg.mxu0
        %v715 = vmul.f32 %v619, %v663
        %v716 = vsel %vm528, %v715, 0.0
        %v717 = vrot.slane %v716, 4
        %v718 = vadd.f32 %v716, %v717
        %v719 = vrot.slane %v718, 2
        %v720 = vadd.f32 %v718, %v719
        %v721 = vrot.slane %v720, 1
        %v722 = vadd.f32 %v720, %v721
        %v723 = vmul.f32 %v663, %v663
        %v724 = vpack.c.bf16 %v723, %v723
        %v726 = vsel %vm621, %v493, 0
        %v729 = vsel %vm498, %v724, 0
        %731 = vmatprep.subr.bf16.mxu0 0
        %732 = vmatpush1.bf16.msra.mxu0 %v729
        %733 = vmatprep.subr.bf16.mxu0 0
        %734 = vmatpush1.bf16.msra.mxu0 0
        %735 = vmatprep.subr.bf16.mxu0 0
        %736 = vmatpush1.bf16.msra.mxu0 0
        %737 = vmatprep.subr.bf16.mxu0 0
        %738 = vmatpush1.bf16.msra.mxu0 0
        %739 = vmatprep.subr.bf16.mxu0 0
        %740 = vmatpush1.bf16.msra.mxu0 0
        %741 = vmatprep.subr.bf16.mxu0 0
        %742 = vmatpush1.bf16.msra.mxu0 0
        %743 = vmatprep.subr.bf16.mxu0 0
        %744 = vmatpush1.bf16.msra.mxu0 0
        %745 = vmatprep.subr.bf16.mxu0 0
        %746 = vmatpush1.bf16.msra.mxu0 0
        %747 = vmatprep.subr.bf16.mxu0 0
        %748 = vmatpush1.bf16.msra.mxu0 0
        %749 = vmatprep.subr.bf16.mxu0 0
        %750 = vmatpush1.bf16.msra.mxu0 0
        %751 = vmatprep.subr.bf16.mxu0 0
        %752 = vmatpush1.bf16.msra.mxu0 0
        %753 = vmatprep.subr.bf16.mxu0 0
        %754 = vmatpush1.bf16.msra.mxu0 0
        %755 = vmatprep.subr.bf16.mxu0 0
        %756 = vmatpush1.bf16.msra.mxu0 0
        %757 = vmatprep.subr.bf16.mxu0 0
        %758 = vmatpush1.bf16.msra.mxu0 0
        %759 = vmatprep.subr.bf16.mxu0 0
        %760 = vmatpush1.bf16.msra.mxu0 0
        %761 = vmatprep.subr.bf16.mxu0 0
        %762 = vmatpush1.bf16.msra.mxu0 0
        %763 = vmatprep.mubr.bf16.mxu0 0
        %764 = vmatmul.mubr.bf16.gmra.mrb[0].mxu0 %v726
        %v765 = vpop.f32.mrb[0].mxu0
        %v766 = vadd.f32 0.0, %v765
        %v767 = vpop.f32.mrb[0].mxu0
        %v768 = vpop.f32.mrb[0].mxu0
        %v769 = vpop.f32.mrb[0].mxu0
        %770 = vdwg.mxu0
        %v771 = vsub.f32 1.0, %v722
        %v772 = vadd.f32 %v771, %v766
        %v773 = vmax.f32 %v772, 0.0
        %v774 = vsub.f32 %v481, %v710
        %v775 = vmul.f32 %v774, %v774
        %v776 = vadd.f32 %v775, %v773
        %v777 = vmul.f32 %v776, -2.0
        %v778 = vadd.f32 %v777, -0.22579135
        %v779 = vsel %vm528, %v778, 0.0
        %780 = vadd.xlane.f32.xlu0 %v779
        %v781 = vpop.xlane.xlu0 %780
        %v782 = vld [vmem:[%s460] sm:$0xff]
        %v783 = vadd.f32 %v782, %v781
        %vm784 = vcmask 7168
        %785 = vst.msk [vmem:[%s460] sm:$0xff] %vm784, %v783
        %v786 = vld [vmem:[%s463] sm:$0x1]
        %v787 = vadd.f32 %v786, %v534
        %vm788 = vcmask 0
        %789 = vst.msk [vmem:[%s463] sm:$0x1] %vm788, %v787
        %v790 = vld [vmem:[%s466] sm:$0x1]
        %v791 = vadd.f32 %v790, %v536
        %792 = vst.msk [vmem:[%s466] sm:$0x1] %vm788, %v791
        %s793 = scalar_lea.vmem %s398, 4 [#allocation2]
        %v794 = vld [vmem:[%s793] sm:$0xf]
        %v795 = vmul.f32 %v480, %v794
        %v796 = vadd.f32 %v477, %v795
        %v797 = vmul.f32 %v794, %v794
        %v798 = vsel %vm494, %v797, 0.0
        %799 = vadd.xlane.f32.xlu0 %v798
        %v800 = vpop.xlane.xlu0 %799
        %v801 = vsel %vm498, %v800, 0.0
        %v802 = vrot.slane %v801, 4
        %v803 = vadd.f32 %v801, %v802
        %v804 = vrot.slane %v803, 2
        %v805 = vadd.f32 %v803, %v804
        %v806 = vrot.slane %v805, 1
        %v807 = vadd.f32 %v805, %v806
        %v808 = vmul.f32 %v796, %v796
        %v809 = vsel %vm494, %v808, 0.0
        %v810 = vrot.slane %v809, 4
        %v811 = vadd.f32 %v809, %v810
        %v812 = vrot.slane %v811, 2
        %v813 = vadd.f32 %v811, %v812
        %v814 = vrot.slane %v813, 1
        %v815 = vadd.f32 %v813, %v814
        %v816 = vsel %vm528, %v815, 0.0
        %817 = vadd.xlane.f32.xlu0 %v816
        %v818 = vpop.xlane.xlu0 %817
        %v819 = vmul.f32 %v807, 0.5
        %v820 = vsub.f32 %v532, %v819
        %v821 = vmul.f32 %v818, 0.5
        %v822 = vsub.f32 -117.62413, %v821
        %v824 = vsel %vm498, %v796, 0
        %826 = vmatprep.subr.mxu0 0.0
        %827 = vmatpush1.msra.mxu0 %v824
        %828 = vmatprep.subr.mxu0 0.0
        %829 = vmatpush1.msra.mxu0 0.0
        %830 = vmatprep.subr.mxu0 0.0
        %831 = vmatpush1.msra.mxu0 0.0
        %832 = vmatprep.subr.mxu0 0.0
        %833 = vmatpush1.msra.mxu0 0.0
        %834 = vmatprep.subr.mxu0 0.0
        %835 = vmatpush1.msra.mxu0 0.0
        %836 = vmatprep.subr.mxu0 0.0
        %837 = vmatpush1.msra.mxu0 0.0
        %838 = vmatprep.subr.mxu0 0.0
        %839 = vmatpush1.msra.mxu0 0.0
        %840 = vmatprep.subr.mxu0 0.0
        %841 = vmatpush1.msra.mxu0 0.0
        %842 = vmatprep.subr.mxu0 0.0
        %843 = vmatpush1.msra.mxu0 0.0
        %844 = vmatprep.subr.mxu0 0.0
        %845 = vmatpush1.msra.mxu0 0.0
        %846 = vmatprep.subr.mxu0 0.0
        %847 = vmatpush1.msra.mxu0 0.0
        %848 = vmatprep.subr.mxu0 0.0
        %849 = vmatpush1.msra.mxu0 0.0
        %850 = vmatprep.subr.mxu0 0.0
        %851 = vmatpush1.msra.mxu0 0.0
        %852 = vmatprep.subr.mxu0 0.0
        %853 = vmatpush1.msra.mxu0 0.0
        %854 = vmatprep.subr.mxu0 0.0
        %855 = vmatpush1.msra.mxu0 0.0
        %856 = vmatprep.subr.mxu0 0.0
        %857 = vmatpush1.msra.mxu0 0.0
        %858 = vmatprep.subr.mxu0 0.0
        %859 = vmatpush1.msra.mxu0 0.0
        %860 = vmatprep.subr.mxu0 0.0
        %861 = vmatpush1.msra.mxu0 0.0
        %862 = vmatprep.subr.mxu0 0.0
        %863 = vmatpush1.msra.mxu0 0.0
        %864 = vmatprep.subr.mxu0 0.0
        %865 = vmatpush1.msra.mxu0 0.0
        %866 = vmatprep.subr.mxu0 0.0
        %867 = vmatpush1.msra.mxu0 0.0
        %868 = vmatprep.subr.mxu0 0.0
        %869 = vmatpush1.msra.mxu0 0.0
        %870 = vmatprep.subr.mxu0 0.0
        %871 = vmatpush1.msra.mxu0 0.0
        %872 = vmatprep.subr.mxu0 0.0
        %873 = vmatpush1.msra.mxu0 0.0
        %874 = vmatprep.subr.mxu0 0.0
        %875 = vmatpush1.msra.mxu0 0.0
        %876 = vmatprep.subr.mxu0 0.0
        %877 = vmatpush1.msra.mxu0 0.0
        %878 = vmatprep.subr.mxu0 0.0
        %879 = vmatpush1.msra.mxu0 0.0
        %880 = vmatprep.subr.mxu0 0.0
        %881 = vmatpush1.msra.mxu0 0.0
        %882 = vmatprep.subr.mxu0 0.0
        %883 = vmatpush1.msra.mxu0 0.0
        %884 = vmatprep.subr.mxu0 0.0
        %885 = vmatpush1.msra.mxu0 0.0
        %886 = vmatprep.subr.mxu0 0.0
        %887 = vmatpush1.msra.mxu0 0.0
        %888 = vmatprep.subr.mxu0 0.0
        %889 = vmatpush1.msra.mxu0 0.0
        %890 = vmatprep.mubr.f32.mxu0 0.0
        %891 = vmatmul.mubr.f32.gmra.mrb[0].mxu0 %v538
        %v892 = vpop.f32.mrb[0].mxu0
        %v893 = vadd.f32 0.0, %v892
        %v894 = vpop.f32.mrb[0].mxu0
        %895 = vdwg.mxu0
        %v896 = vadd.f32 %v487, %v815
        %v897 = vmul.f32 %v893, 2.0
        %v898 = vsub.f32 %v896, %v897
        %v899 = vmax.f32 %v898, 0.0
        %v900 = vmul.f32 %v899, -0.22222222
        %v901 = vmul.f32 %v900, 1.442695
        %v902 = vpow.pop %v901
        %v903 = vpack.c.bf16 %v902, %v902
        %v905 = vsel %vm498, %v903, 0
        %907 = vmatprep.subr.bf16.mxu0 0
        %908 = vmatpush1.bf16.msra.mxu0 %v905
        %909 = vmatprep.subr.bf16.mxu0 0
        %910 = vmatpush1.bf16.msra.mxu0 0
        %911 = vmatprep.subr.bf16.mxu0 0
        %912 = vmatpush1.bf16.msra.mxu0 0
        %913 = vmatprep.subr.bf16.mxu0 0
        %914 = vmatpush1.bf16.msra.mxu0 0
        %915 = vmatprep.subr.bf16.mxu0 0
        %916 = vmatpush1.bf16.msra.mxu0 0
        %917 = vmatprep.subr.bf16.mxu0 0
        %918 = vmatpush1.bf16.msra.mxu0 0
        %919 = vmatprep.subr.bf16.mxu0 0
        %920 = vmatpush1.bf16.msra.mxu0 0
        %921 = vmatprep.subr.bf16.mxu0 0
        %922 = vmatpush1.bf16.msra.mxu0 0
        %923 = vmatprep.subr.bf16.mxu0 0
        %924 = vmatpush1.bf16.msra.mxu0 0
        %925 = vmatprep.subr.bf16.mxu0 0
        %926 = vmatpush1.bf16.msra.mxu0 0
        %927 = vmatprep.subr.bf16.mxu0 0
        %928 = vmatpush1.bf16.msra.mxu0 0
        %929 = vmatprep.subr.bf16.mxu0 0
        %930 = vmatpush1.bf16.msra.mxu0 0
        %931 = vmatprep.subr.bf16.mxu0 0
        %932 = vmatpush1.bf16.msra.mxu0 0
        %933 = vmatprep.subr.bf16.mxu0 0
        %934 = vmatpush1.bf16.msra.mxu0 0
        %935 = vmatprep.subr.bf16.mxu0 0
        %936 = vmatpush1.bf16.msra.mxu0 0
        %937 = vmatprep.subr.bf16.mxu0 0
        %938 = vmatpush1.bf16.msra.mxu0 0
        %939 = vmatprep.mubr.bf16.mxu0 0
        %940 = vmatmul.mubr.bf16.gmra.mrb[0].mxu0 %v623
        %v941 = vpop.f32.mrb[0].mxu0
        %v942 = vadd.f32 0.0, %v941
        %v943 = vpop.f32.mrb[0].mxu0
        %v944 = vpop.f32.mrb[0].mxu0
        %v945 = vpop.f32.mrb[0].mxu0
        %946 = vdwg.mxu0
        %v947 = vpack.c.bf16 %v942, %v942
        %v949 = vsel %vm498, %v947, 0
        %951 = vmatprep.subr.bf16.mxu0 0
        %952 = vmatpush1.bf16.msra.mxu0 %v949
        %953 = vmatprep.subr.bf16.mxu0 0
        %954 = vmatpush1.bf16.msra.mxu0 0
        %955 = vmatprep.subr.bf16.mxu0 0
        %956 = vmatpush1.bf16.msra.mxu0 0
        %957 = vmatprep.subr.bf16.mxu0 0
        %958 = vmatpush1.bf16.msra.mxu0 0
        %959 = vmatprep.subr.bf16.mxu0 0
        %960 = vmatpush1.bf16.msra.mxu0 0
        %961 = vmatprep.subr.bf16.mxu0 0
        %962 = vmatpush1.bf16.msra.mxu0 0
        %963 = vmatprep.subr.bf16.mxu0 0
        %964 = vmatpush1.bf16.msra.mxu0 0
        %965 = vmatprep.subr.bf16.mxu0 0
        %966 = vmatpush1.bf16.msra.mxu0 0
        %967 = vmatprep.subr.bf16.mxu0 0
        %968 = vmatpush1.bf16.msra.mxu0 0
        %969 = vmatprep.subr.bf16.mxu0 0
        %970 = vmatpush1.bf16.msra.mxu0 0
        %971 = vmatprep.subr.bf16.mxu0 0
        %972 = vmatpush1.bf16.msra.mxu0 0
        %973 = vmatprep.subr.bf16.mxu0 0
        %974 = vmatpush1.bf16.msra.mxu0 0
        %975 = vmatprep.subr.bf16.mxu0 0
        %976 = vmatpush1.bf16.msra.mxu0 0
        %977 = vmatprep.subr.bf16.mxu0 0
        %978 = vmatpush1.bf16.msra.mxu0 0
        %979 = vmatprep.subr.bf16.mxu0 0
        %980 = vmatpush1.bf16.msra.mxu0 0
        %981 = vmatprep.subr.bf16.mxu0 0
        %982 = vmatpush1.bf16.msra.mxu0 0
        %983 = vmatprep.mubr.bf16.mxu0 0
        %984 = vmatmul.mubr.bf16.gmra.mrb[0].mxu0 %v670
        %v985 = vpop.f32.mrb[0].mxu0
        %v986 = vadd.f32 0.0, %v985
        %v987 = vpop.f32.mrb[0].mxu0
        %v988 = vpop.f32.mrb[0].mxu0
        %v989 = vpop.f32.mrb[0].mxu0
        %990 = vdwg.mxu0
        %v991 = vmul.f32 %v902, %v942
        %v992 = vsel %vm528, %v991, 0.0
        %v993 = vrot.slane %v992, 4
        %v994 = vadd.f32 %v992, %v993
        %v995 = vrot.slane %v994, 2
        %v996 = vadd.f32 %v994, %v995
        %v997 = vrot.slane %v996, 1
        %v998 = vadd.f32 %v996, %v997
        %v999 = vmul.f32 %v942, %v942
        %v1000 = vpack.c.bf16 %v999, %v999
        %v1002 = vsel %vm498, %v1000, 0
        %1004 = vmatprep.subr.bf16.mxu0 0
        %1005 = vmatpush1.bf16.msra.mxu0 %v1002
        %1006 = vmatprep.subr.bf16.mxu0 0
        %1007 = vmatpush1.bf16.msra.mxu0 0
        %1008 = vmatprep.subr.bf16.mxu0 0
        %1009 = vmatpush1.bf16.msra.mxu0 0
        %1010 = vmatprep.subr.bf16.mxu0 0
        %1011 = vmatpush1.bf16.msra.mxu0 0
        %1012 = vmatprep.subr.bf16.mxu0 0
        %1013 = vmatpush1.bf16.msra.mxu0 0
        %1014 = vmatprep.subr.bf16.mxu0 0
        %1015 = vmatpush1.bf16.msra.mxu0 0
        %1016 = vmatprep.subr.bf16.mxu0 0
        %1017 = vmatpush1.bf16.msra.mxu0 0
        %1018 = vmatprep.subr.bf16.mxu0 0
        %1019 = vmatpush1.bf16.msra.mxu0 0
        %1020 = vmatprep.subr.bf16.mxu0 0
        %1021 = vmatpush1.bf16.msra.mxu0 0
        %1022 = vmatprep.subr.bf16.mxu0 0
        %1023 = vmatpush1.bf16.msra.mxu0 0
        %1024 = vmatprep.subr.bf16.mxu0 0
        %1025 = vmatpush1.bf16.msra.mxu0 0
        %1026 = vmatprep.subr.bf16.mxu0 0
        %1027 = vmatpush1.bf16.msra.mxu0 0
        %1028 = vmatprep.subr.bf16.mxu0 0
        %1029 = vmatpush1.bf16.msra.mxu0 0
        %1030 = vmatprep.subr.bf16.mxu0 0
        %1031 = vmatpush1.bf16.msra.mxu0 0
        %1032 = vmatprep.subr.bf16.mxu0 0
        %1033 = vmatpush1.bf16.msra.mxu0 0
        %1034 = vmatprep.subr.bf16.mxu0 0
        %1035 = vmatpush1.bf16.msra.mxu0 0
        %1036 = vmatprep.mubr.bf16.mxu0 0
        %1037 = vmatmul.mubr.bf16.gmra.mrb[0].mxu0 %v726
        %v1038 = vpop.f32.mrb[0].mxu0
        %v1039 = vadd.f32 0.0, %v1038
        %v1040 = vpop.f32.mrb[0].mxu0
        %v1041 = vpop.f32.mrb[0].mxu0
        %v1042 = vpop.f32.mrb[0].mxu0
        %1043 = vdwg.mxu0
        %v1044 = vsub.f32 1.0, %v998
        %v1045 = vadd.f32 %v1044, %v1039
        %v1046 = vmax.f32 %v1045, 0.0
        %v1047 = vsub.f32 %v481, %v986
        %v1048 = vmul.f32 %v1047, %v1047
        %v1049 = vadd.f32 %v1048, %v1046
        %v1050 = vmul.f32 %v1049, -2.0
        %v1051 = vadd.f32 %v1050, -0.22579135
        %v1052 = vsel %vm528, %v1051, 0.0
        %1053 = vadd.xlane.f32.xlu0 %v1052
        %v1054 = vpop.xlane.xlu0 %1053
        %v1055 = vld [vmem:[%s460] sm:$0xff]
        %v1056 = vadd.f32 %v1055, %v1054
        %vm1057 = vcmask 15368
        %1058 = vst.msk [vmem:[%s460] sm:$0xff] %vm1057, %v1056
        %v1059 = vld [vmem:[%s463] sm:$0x1]
        %v1060 = vadd.f32 %v1059, %v820
        %vm1061 = vcmask 8200
        %1062 = vst.msk [vmem:[%s463] sm:$0x1] %vm1061, %v1060
        %v1063 = vld [vmem:[%s466] sm:$0x1]
        %v1064 = vadd.f32 %v1063, %v822
        %1065 = vst.msk [vmem:[%s466] sm:$0x1] %vm1061, %v1064
        %p1066 = scmp.lt.s32.totalorder %s30, 3
        %s1067 = scalar_select %p1066, %s30, 3
        %s1068 = smul.addr %s1067, 8
        %s1069 = scalar_lea.vmem %s8, %s1068
        %p1070 = scmp.lt.s32.totalorder %s30, 3
        %s1071 = scalar_select %p1070, %s30, 3
        %s1072 = scalar_lea.vmem %s9, %s1071
        %p1073 = scmp.lt.s32.totalorder %s30, 3
        %s1074 = scalar_select %p1073, %s30, 3
        %s1075 = scalar_lea.vmem %s10, %s1074
        // Predicated region
        $region69: #{tpu_custom_call.1} parent=51 // pred_check
          %p1076 = pneg %p246
        $region70: #{tpu_custom_call.1} parent=51 // pred_check_branch
          %1078 = sbr.rel (%p1076) target = $region72
        $region71: #{tpu_custom_call.1} parent=51 // pred_region
          _
        $region72: #{tpu_custom_call.1} parent=51 // pred_fallthru
          _
        // Predicated region
        $region73: #{tpu_custom_call.1} parent=51 // pred_check
          %p1079 = pneg %p272
        $region74: #{tpu_custom_call.1} parent=51 // pred_check_branch
          %1081 = sbr.rel (%p1079) target = $region76
        $region75: #{tpu_custom_call.1} parent=51 // pred_region
          _
        $region76: #{tpu_custom_call.1} parent=51 // pred_fallthru
          _
        // Predicated region
        $region77: #{tpu_custom_call.1} parent=51 // pred_check
          %p1082 = pneg %p298
        $region78: #{tpu_custom_call.1} parent=51 // pred_check_branch
          %1084 = sbr.rel (%p1082) target = $region80
        $region79: #{tpu_custom_call.1} parent=51 // pred_region
          _
        $region80: #{tpu_custom_call.1} parent=51 // pred_fallthru
          _
      $region52: #{tpu_custom_call.1} parent=5 // pred_fallthru
        _
      %p1085 = scmp.le.s32.totalorder 2, %s21
      // Predicated region
      $region81: #{tpu_custom_call.1} parent=5 // pred_check
        %p1086 = pneg %p1085
      $region82: #{tpu_custom_call.1} parent=5 // pred_check_branch
        %1088 = sbr.rel (%p1086) target = $region84
      $region83: #{tpu_custom_call.1} parent=5 // pred_region
        %s1089 = ssub.s32 %s21, 2
        // Predicated region
        $region85: #{tpu_custom_call.1} parent=83 // pred_check
          %p1090 = pneg %p252
        $region86: #{tpu_custom_call.1} parent=83 // pred_check_branch
          %1092 = sbr.rel (%p1090) target = $region88
        $region87: #{tpu_custom_call.1} parent=83 // pred_region
          %p1093 = scmp.lt.s32.totalorder %s32, 3
          %s1094 = scalar_select %p1093, %s32, 3
          %s1095 = smul.addr %s1094, 8
          %s1096 = scalar_lea.vmem %s8, %s1095
        $region88: #{tpu_custom_call.1} parent=83 // pred_fallthru
          _
        // Predicated region
        $region89: #{tpu_custom_call.1} parent=83 // pred_check
          %p1097 = pneg %p278
        $region90: #{tpu_custom_call.1} parent=83 // pred_check_branch
          %1099 = sbr.rel (%p1097) target = $region92
        $region91: #{tpu_custom_call.1} parent=83 // pred_region
          %p1100 = scmp.lt.s32.totalorder %s32, 3
          %s1101 = scalar_select %p1100, %s32, 3
          %s1102 = scalar_lea.vmem %s9, %s1101
        $region92: #{tpu_custom_call.1} parent=83 // pred_fallthru
          _
        // Predicated region
        $region93: #{tpu_custom_call.1} parent=83 // pred_check
          %p1103 = pneg %p304
        $region94: #{tpu_custom_call.1} parent=83 // pred_check_branch
          %1105 = sbr.rel (%p1103) target = $region96
        $region95: #{tpu_custom_call.1} parent=83 // pred_region
          %p1106 = scmp.lt.s32.totalorder %s32, 3
          %s1107 = scalar_select %p1106, %s32, 3
          %s1108 = scalar_lea.vmem %s10, %s1107
        $region96: #{tpu_custom_call.1} parent=83 // pred_fallthru
          _
      $region84: #{tpu_custom_call.1} parent=5 // pred_fallthru
        _
    $region6: #{tpu_custom_call.1} parent=1 // loop_footer
      %s25 = sadd.s32 1, %s21
    $region7: #{tpu_custom_call.1} parent=1 // loop_footer_branch
      %20 = sbr.rel target = $region3
    $region8: #{tpu_custom_call.1} parent=1 // loop_exit
      _
    %1109 = vsyncpa [#allocation3], 1
    %s1110 = scalar_lea.sflag [#allocation3], 1
    %1111 = vsyncpa %s1110, 1
    %1112 = vsyncpa [#allocation5], 1

</llo_original>
